<compile_context>
chip_gen: v7x
topology: tpu7x:2x2x1
jax: 0.10.0
libtpu: 0.0.40
codegen_flags: <defaults>
</compile_context>

<pallas_src>
import math
import numpy as np
import jax
import jax.numpy as jnp
from jax import lax
from jax.experimental import pallas as pl
from jax.experimental.pallas import tpu as pltpu

# ----- small config consistent with the module structure -----
BATCH = 2
SEQ_LEN = 8
NFEATURE = 32
DMODEL = 64
NHEAD = 4
DK = DMODEL // NHEAD          # 16
DFF = 4 * DMODEL              # 256
POOL = 16                     # MaxPool1d kernel/stride over the feature dim
DP = DMODEL // POOL           # 4 pooled features per position
LN_EPS = 1e-5
SEGS_PER_ROW = DMODEL // DK   # 4: 4 (1,DK) lane segments per ctx row
NEG_INF = -1e30


def _layer_norm(x, g, b):
    mu = jnp.mean(x, axis=-1, keepdims=True)
    var = jnp.mean((x - mu) ** 2, axis=-1, keepdims=True)
    return (x - mu) * lax.rsqrt(var + LN_EPS) * g + b


# ------------------------------------------------------------------
# Single fused kernel. `bb` batch elements per grid step (bb = 1 when
# gridding over batch, bb = BATCH when one grid step covers everything).
# All dense ops are batched over the bb*SEQ_LEN row dimension.
# ------------------------------------------------------------------
def _fused_kernel(x_ref, wemb_ref, bemb_ref, pe_ref, wqkv_ref, bias_ref, sel_ref,
                  wo_ref, g1_ref, b1n_ref, w1_ref, b1_ref, w2_ref, b2_ref,
                  g2_ref, b2n_ref, wfc_ref, bfc_ref, rsum_ref, out_ref):
    bb = out_ref.shape[0]
    scale = 1.0 / math.sqrt(float(DK))

    # --- embedding + positional encoding (dropout = identity) ---
    x = x_ref[...]                                               # (bb*S, F)
    xp = (jnp.dot(x, wemb_ref[...], preferred_element_type=jnp.float32)
          + bemb_ref[...] + pe_ref[...])                         # (bb*S, D)

    # --- fused QKV projection for all heads ---
    qkv = jnp.dot(xp, wqkv_ref[...], preferred_element_type=jnp.float32)  # (bb*S, 3D)

    # Stack per-(batch, head) Q/K/V blocks along sublanes: (bb*H*S, DK)
    q_parts, k_parts, v_parts = [], [], []
    for b in range(bb):
        r0, r1 = b * SEQ_LEN, (b + 1) * SEQ_LEN
        for h in range(NHEAD):
            q_parts.append(qkv[r0:r1, h * DK:(h + 1) * DK])
            k_parts.append(qkv[r0:r1, DMODEL + h * DK:DMODEL + (h + 1) * DK])
            v_parts.append(qkv[r0:r1, 2 * DMODEL + h * DK:2 * DMODEL + (h + 1) * DK])
    qs = jnp.concatenate(q_parts, axis=0)
    ks = jnp.concatenate(k_parts, axis=0)
    vs = jnp.concatenate(v_parts, axis=0)

    # Block-diagonal masked attention: one scores matmul + one softmax + one PV.
    s = lax.dot_general(qs, ks, (((1,), (1,)), ((), ())),
                        preferred_element_type=jnp.float32)      # (bb*H*S, bb*H*S)
    s = s * scale + bias_ref[...]                                # -1e30 off-block
    m = jnp.max(s, axis=-1, keepdims=True)
    e = jnp.exp(s - m)
    p = e * pl.reciprocal(jnp.sum(e, axis=-1, keepdims=True), approx=True)
    heads = jnp.dot(p, vs, preferred_element_type=jnp.float32)   # (bb*H*S, DK)

    # Torch's peculiar reshape (bb,H,S,DK) -> (bb*S, D): 4 constant selection
    # matmuls (one per 16-lane segment), then a single lane concat.
    ctx = jnp.concatenate(
        [jnp.dot(sel_ref[j], heads, preferred_element_type=jnp.float32)
         for j in range(SEGS_PER_ROW)], axis=1)                  # (bb*S, D)

    attn = jnp.dot(ctx, wo_ref[...], preferred_element_type=jnp.float32)
    x1 = _layer_norm(attn + xp, g1_ref[...], b1n_ref[...])       # dropout1 = id

    # --- feed-forward ---
    h1 = jnp.maximum(
        jnp.dot(x1, w1_ref[...], preferred_element_type=jnp.float32) + b1_ref[...], 0.0)
    h2 = jnp.dot(h1, w2_ref[...], preferred_element_type=jnp.float32) + b2_ref[...]
    x2 = _layer_norm(h2 + x1, g2_ref[...], b2n_ref[...])         # dropout2 = id

    # --- MaxPool1d(16,16) over features fused with the FC ---
    wfc = wfc_ref[...]                                           # (bb*S, DP, 2)
    acc = jnp.zeros((bb * SEQ_LEN, 2), dtype=jnp.float32)
    for c in range(DP):
        col = jnp.max(x2[:, c * POOL:(c + 1) * POOL], axis=-1, keepdims=True)
        acc = acc + col * wfc[:, c, :]                           # (bb*S, 2)
    # per-batch reduction over the S rows with a constant 0/1 matrix
    logits = jnp.dot(rsum_ref[...], acc,
                     preferred_element_type=jnp.float32) + bfc_ref[...]   # (bb, 2)

    # log_softmax
    mlog = jnp.max(logits, axis=-1, keepdims=True)
    z = logits - mlog
    lse = jnp.log(jnp.sum(jnp.exp(z), axis=-1, keepdims=True))
    out_ref[...] = (z - lse)[:, None, :]                         # (bb, 1, 2)


def _bcast_spec(shape):
    n = len(shape)
    return pl.BlockSpec(shape, lambda i, n=n: (0,) * n)


def _single_tensorcore_chip():
    # v5e / v6e: one TensorCore per chip -> collapse batch grid to one step.
    # v7x (and others): keep grid=(BATCH,) "parallel" to shard batch over TCs.
    try:
        kind = jax.devices()[0].device_kind.lower()
    except Exception:
        return False
    return ("v5" in kind) or ("v6" in kind)


def _batch_constants(bb):
    """Constant helper matrices for a given per-step batch size bb."""
    R = bb * SEQ_LEN                 # rows of the batched activations
    M = bb * NHEAD * SEQ_LEN         # rows of the stacked (batch, head) blocks

    blk = np.arange(M) // SEQ_LEN    # (batch, head) block id of each stacked row
    bias = np.where(blk[:, None] == blk[None, :], 0.0, NEG_INF).astype(np.float32)

    # sel[seg, b*S + s', b*H*S + 4*s' + seg] = 1  (torch reshape gather)
    sel = np.zeros((SEGS_PER_ROW, R, M), np.float32)
    for b in range(bb):
        for sp in range(SEQ_LEN):
            for seg in range(SEGS_PER_ROW):
                sel[seg, b * SEQ_LEN + sp,
                    b * NHEAD * SEQ_LEN + SEGS_PER_ROW * sp + seg] = 1.0

    rsum = np.zeros((bb, R), np.float32)
    for b in range(bb):
        rsum[b, b * SEQ_LEN:(b + 1) * SEQ_LEN] = 1.0

    return jnp.asarray(bias), jnp.asarray(sel), jnp.asarray(rsum)


def transformer_forward(x, params, *, batch_grid=None):
    B = x.shape[0]
    f32 = jnp.float32
    if batch_grid is None:
        batch_grid = not _single_tensorcore_chip()
    bb = 1 if batch_grid else B
    grid = (B // bb,)
    R = bb * SEQ_LEN
    M = bb * NHEAD * SEQ_LEN

    bias, sel, rsum = _batch_constants(bb)
    pe_t = jnp.tile(params["pe"], (bb, 1))            # (bb*S, D)
    wfc_t = jnp.tile(params["w_fc_r"], (bb, 1, 1))    # (bb*S, DP, 2)
    x2d = x.reshape(B * SEQ_LEN, NFEATURE)

    out = pl.pallas_call(
        _fused_kernel,
        out_shape=jax.ShapeDtypeStruct((B, 1, 2), f32),
        grid=grid,
        in_specs=[
            pl.BlockSpec((R, NFEATURE), lambda i: (i, 0)),   # x (rows per step)
            _bcast_spec((NFEATURE, DMODEL)),                 # w_emb
            _bcast_spec((1, DMODEL)),                        # b_emb
            _bcast_spec((R, DMODEL)),                        # pe (tiled)
            _bcast_spec((DMODEL, 3 * DMODEL)),               # w_qkv
            _bcast_spec((M, M)),                             # block-diag bias
            _bcast_spec((SEGS_PER_ROW, R, M)),               # reshape selectors
            _bcast_spec((DMODEL, DMODEL)),                   # wo
            _bcast_spec((1, DMODEL)),                        # ln1 gamma
            _bcast_spec((1, DMODEL)),                        # ln1 beta
            _bcast_spec((DMODEL, DFF)),                      # w1
            _bcast_spec((1, DFF)),                           # b1
            _bcast_spec((DFF, DMODEL)),                      # w2
            _bcast_spec((1, DMODEL)),                        # b2
            _bcast_spec((1, DMODEL)),                        # ln2 gamma
            _bcast_spec((1, DMODEL)),                        # ln2 beta
            _bcast_spec((R, DP, 2)),                         # FC weight (tiled)
            _bcast_spec((1, 2)),                             # FC bias
            _bcast_spec((bb, R)),                            # per-batch row-sum
        ],
        out_specs=pl.BlockSpec((bb, 1, 2), lambda i: (i, 0, 0)),
        compiler_params=pltpu.CompilerParams(dimension_semantics=("parallel",)),
    )(x2d, params["w_emb"], params["b_emb"], pe_t, params["w_qkv"], bias, sel,
      params["wo"], params["ln1_g"], params["ln1_b"],
      params["w1"], params["b1"], params["w2"], params["b2"],
      params["ln2_g"], params["ln2_b"], wfc_t, params["b_fc"], rsum)

    return out.reshape(B, 2)


# ------------------------------------------------------------------
# Deterministic parameter initialization (shapes from the module's __init__).
# ------------------------------------------------------------------
def init_params(key):
    ks = jax.random.split(key, 11)
    u = lambda k, shape, lo, hi: jax.random.uniform(k, shape, jnp.float32, lo, hi)
    ir = 0.1

    emb_b = 1.0 / math.sqrt(NFEATURE)
    w_emb = u(ks[0], (NFEATURE, DMODEL), -emb_b, emb_b)
    b_emb = u(ks[1], (1, DMODEL), -emb_b, emb_b)

    pos = np.arange(SEQ_LEN, dtype=np.float32)[:, None]
    div = np.exp(np.arange(0, DMODEL, 2, dtype=np.float32) * (-math.log(10000.0) / DMODEL))
    pe = np.zeros((SEQ_LEN, DMODEL), np.float32)
    pe[:, 0::2] = np.sin(pos * div)
    pe[:, 1::2] = np.cos(pos * div)

    wq = u(ks[2], (NHEAD, DMODEL, DK), -ir, ir)
    wk = u(ks[3], (NHEAD, DMODEL, DK), -ir, ir)
    wv = u(ks[4], (NHEAD, DMODEL, DK), -ir, ir)
    wo = u(ks[5], (NHEAD * DK, DMODEL), -ir, ir)

    # Fused QKV weight for the kernel: columns = [Q heads | K heads | V heads]
    wq_c = jnp.transpose(wq, (1, 0, 2)).reshape(DMODEL, NHEAD * DK)
    wk_c = jnp.transpose(wk, (1, 0, 2)).reshape(DMODEL, NHEAD * DK)
    wv_c = jnp.transpose(wv, (1, 0, 2)).reshape(DMODEL, NHEAD * DK)
    w_qkv = jnp.concatenate([wq_c, wk_c, wv_c], axis=1)          # (D, 3*H*DK)

    l1_b = 1.0 / math.sqrt(DMODEL)
    w1 = u(ks[6], (DMODEL, DFF), -l1_b, l1_b)
    b1 = u(ks[7], (1, DFF), -l1_b, l1_b)
    l2_b = 1.0 / math.sqrt(DFF)
    w2 = u(ks[8], (DFF, DMODEL), -l2_b, l2_b)
    b2 = u(ks[9], (1, DMODEL), -l2_b, l2_b)

    w_fc = u(ks[10], (SEQ_LEN * DP, 2), -ir, ir)

    return dict(
        w_emb=w_emb, b_emb=b_emb, pe=jnp.asarray(pe),
        wq=wq, wk=wk, wv=wv, w_qkv=w_qkv, wo=wo,
        ln1_g=jnp.ones((1, DMODEL), jnp.float32), ln1_b=jnp.zeros((1, DMODEL), jnp.float32),
        w1=w1, b1=b1, w2=w2, b2=b2,
        ln2_g=jnp.ones((1, DMODEL), jnp.float32), ln2_b=jnp.zeros((1, DMODEL), jnp.float32),
        w_fc_r=w_fc.reshape(SEQ_LEN, DP, 2),       # matches torch flatten order s*DP + c
        b_fc=jnp.zeros((1, 2), jnp.float32),
    )


# ------------------------------------------------------------------
# Pure-JAX reference (for a correctness check of the Pallas kernel).
# ------------------------------------------------------------------
def _ln_ref(x, g, b):
    mu = x.mean(-1, keepdims=True)
    var = ((x - mu) ** 2).mean(-1, keepdims=True)
    return (x - mu) / jnp.sqrt(var + LN_EPS) * g + b


def reference_forward(x, p):
    xp = x @ p["w_emb"] + p["b_emb"] + p["pe"]
    q = jnp.einsum('bsd,hdk->bhsk', xp, p["wq"])
    k = jnp.einsum('bsd,hdk->bhsk', xp, p["wk"])
    v = jnp.einsum('bsd,hdk->bhsk', xp, p["wv"])
    s = jnp.einsum('bhsk,bhtk->bhst', q, k) / math.sqrt(DK)
    head = jnp.einsum('bhst,bhtk->bhsk', jax.nn.softmax(s, -1), v)
    ctx = head.reshape(-1, SEQ_LEN, NHEAD * DK)          # torch's peculiar reshape
    x1 = _ln_ref(ctx @ p["wo"] + xp, p["ln1_g"], p["ln1_b"])
    h = jax.nn.relu(x1 @ p["w1"] + p["b1"]) @ p["w2"] + p["b2"]
    x2 = _ln_ref(h + x1, p["ln2_g"], p["ln2_b"])
    pooled = x2.reshape(x2.shape[0], SEQ_LEN, DP, POOL).max(-1)
    logits = pooled.reshape(-1, SEQ_LEN * DP) @ p["w_fc_r"].reshape(SEQ_LEN * DP, 2) + p["b_fc"]
    return jax.nn.log_softmax(logits, axis=-1)


if __name__ == "__main__":
    key = jax.random.PRNGKey(0)
    k_param, k_x = jax.random.split(key)
    params = init_params(k_param)
    x = jax.random.normal(k_x, (BATCH, SEQ_LEN, NFEATURE), dtype=jnp.float32)

    ref = jax.block_until_ready(reference_forward(x, params))

    # Default (chip-aware) configuration.
    out = jax.block_until_ready(transformer_forward(x, params))
    assert out.shape == (BATCH, 2)
    np.testing.assert_allclose(np.asarray(out), np.asarray(ref), rtol=2e-3, atol=2e-3)

    # Exercise both grid configurations so the kernel is validated on any chip.
    for bg in (True, False):
        o = jax.block_until_ready(transformer_forward(x, params, batch_grid=bg))
        np.testing.assert_allclose(np.asarray(o), np.asarray(ref), rtol=2e-3, atol=2e-3)

    print("KERNEL_OK")
</pallas_src>

<mosaic_0001>
module attributes {stable_mosaic.version = 11 : i64} {
  func.func @_fused_kernel(%arg0: i32, %arg1: memref<8x32xf32, #tpu.memory_space<vmem>>, %arg2: memref<32x64xf32, #tpu.memory_space<vmem>>, %arg3: memref<1x64xf32, #tpu.memory_space<vmem>>, %arg4: memref<8x64xf32, #tpu.memory_space<vmem>>, %arg5: memref<64x192xf32, #tpu.memory_space<vmem>>, %arg6: memref<32x32xf32, #tpu.memory_space<vmem>>, %arg7: memref<4x8x32xf32, #tpu.memory_space<vmem>>, %arg8: memref<64x64xf32, #tpu.memory_space<vmem>>, %arg9: memref<1x64xf32, #tpu.memory_space<vmem>>, %arg10: memref<1x64xf32, #tpu.memory_space<vmem>>, %arg11: memref<64x256xf32, #tpu.memory_space<vmem>>, %arg12: memref<1x256xf32, #tpu.memory_space<vmem>>, %arg13: memref<256x64xf32, #tpu.memory_space<vmem>>, %arg14: memref<1x64xf32, #tpu.memory_space<vmem>>, %arg15: memref<1x64xf32, #tpu.memory_space<vmem>>, %arg16: memref<1x64xf32, #tpu.memory_space<vmem>>, %arg17: memref<8x4x2xf32, #tpu.memory_space<vmem>>, %arg18: memref<1x2xf32, #tpu.memory_space<vmem>>, %arg19: memref<1x8xf32, #tpu.memory_space<vmem>>, %arg20: memref<1x1x2xf32, #tpu.memory_space<vmem>>) attributes {dimension_semantics = [#tpu.dimension_semantics<parallel>], iteration_bounds = array<i64: 2>, scalar_prefetch = 0 : i64, scratch_operands = 0 : i64, tpu.core_type = #tpu.core_type<tc>, window_params = [{transform_indices = @transform_0, window_bounds = array<i64: 8, 32>}, {pipeline_mode = #tpu.pipeline_mode<synchronous>, transform_indices = @transform_1, window_bounds = array<i64: 32, 64>}, {pipeline_mode = #tpu.pipeline_mode<synchronous>, transform_indices = @transform_2, window_bounds = array<i64: 1, 64>}, {pipeline_mode = #tpu.pipeline_mode<synchronous>, transform_indices = @transform_3, window_bounds = array<i64: 8, 64>}, {pipeline_mode = #tpu.pipeline_mode<synchronous>, transform_indices = @transform_4, window_bounds = array<i64: 64, 192>}, {pipeline_mode = #tpu.pipeline_mode<synchronous>, transform_indices = @transform_5, window_bounds = array<i64: 32, 32>}, {pipeline_mode = #tpu.pipeline_mode<synchronous>, transform_indices = @transform_6, window_bounds = array<i64: 4, 8, 32>}, {pipeline_mode = #tpu.pipeline_mode<synchronous>, transform_indices = @transform_7, window_bounds = array<i64: 64, 64>}, {pipeline_mode = #tpu.pipeline_mode<synchronous>, transform_indices = @transform_8, window_bounds = array<i64: 1, 64>}, {pipeline_mode = #tpu.pipeline_mode<synchronous>, transform_indices = @transform_9, window_bounds = array<i64: 1, 64>}, {pipeline_mode = #tpu.pipeline_mode<synchronous>, transform_indices = @transform_10, window_bounds = array<i64: 64, 256>}, {pipeline_mode = #tpu.pipeline_mode<synchronous>, transform_indices = @transform_11, window_bounds = array<i64: 1, 256>}, {pipeline_mode = #tpu.pipeline_mode<synchronous>, transform_indices = @transform_12, window_bounds = array<i64: 256, 64>}, {pipeline_mode = #tpu.pipeline_mode<synchronous>, transform_indices = @transform_13, window_bounds = array<i64: 1, 64>}, {pipeline_mode = #tpu.pipeline_mode<synchronous>, transform_indices = @transform_14, window_bounds = array<i64: 1, 64>}, {pipeline_mode = #tpu.pipeline_mode<synchronous>, transform_indices = @transform_15, window_bounds = array<i64: 1, 64>}, {pipeline_mode = #tpu.pipeline_mode<synchronous>, transform_indices = @transform_16, window_bounds = array<i64: 8, 4, 2>}, {pipeline_mode = #tpu.pipeline_mode<synchronous>, transform_indices = @transform_17, window_bounds = array<i64: 1, 2>}, {pipeline_mode = #tpu.pipeline_mode<synchronous>, transform_indices = @transform_18, window_bounds = array<i64: 1, 8>}, {transform_indices = @transform_19, window_bounds = array<i64: 1, 1, 2>}]} {
    %c0 = arith.constant 0 : index
    %c0_0 = arith.constant 0 : index
    %0 = vector.load %arg1[%c0, %c0_0] : memref<8x32xf32, #tpu.memory_space<vmem>>, vector<8x32xf32>
    %c0_1 = arith.constant 0 : index
    %c0_2 = arith.constant 0 : index
    %1 = vector.load %arg2[%c0_1, %c0_2] : memref<32x64xf32, #tpu.memory_space<vmem>>, vector<32x64xf32>
    %cst = arith.constant dense<0.000000e+00> : vector<8x64xf32>
    %2 = tpu.matmul %0, %1, %cst {dimension_numbers = #tpu.dot_dimension_numbers<[1], [0], [0], [1], [0, 0, 1, 1], [], []>} : vector<8x32xf32>, vector<32x64xf32>, vector<8x64xf32> -> vector<8x64xf32>
    %c0_3 = arith.constant 0 : index
    %c0_4 = arith.constant 0 : index
    %3 = vector.load %arg3[%c0_3, %c0_4] : memref<1x64xf32, #tpu.memory_space<vmem>>, vector<1x64xf32>
    %4 = vector.broadcast %3 : vector<1x64xf32> to vector<8x64xf32>
    %5 = arith.addf %2, %4 : vector<8x64xf32>
    %c0_5 = arith.constant 0 : index
    %c0_6 = arith.constant 0 : index
    %6 = vector.load %arg4[%c0_5, %c0_6] : memref<8x64xf32, #tpu.memory_space<vmem>>, vector<8x64xf32>
    %7 = arith.addf %5, %6 : vector<8x64xf32>
    %c0_7 = arith.constant 0 : index
    %c0_8 = arith.constant 0 : index
    %8 = vector.load %arg5[%c0_7, %c0_8] : memref<64x192xf32, #tpu.memory_space<vmem>>, vector<64x192xf32>
    %cst_9 = arith.constant dense<0.000000e+00> : vector<8x192xf32>
    %9 = tpu.matmul %7, %8, %cst_9 {dimension_numbers = #tpu.dot_dimension_numbers<[1], [0], [0], [1], [0, 0, 1, 1], [], []>} : vector<8x64xf32>, vector<64x192xf32>, vector<8x192xf32> -> vector<8x192xf32>
    %10 = vector.extract_strided_slice %9 {offsets = [0, 0], sizes = [8, 16], strides = [1, 1]} : vector<8x192xf32> to vector<8x16xf32>
    %11 = vector.extract_strided_slice %9 {offsets = [0, 64], sizes = [8, 16], strides = [1, 1]} : vector<8x192xf32> to vector<8x16xf32>
    %12 = vector.extract_strided_slice %9 {offsets = [0, 128], sizes = [8, 16], strides = [1, 1]} : vector<8x192xf32> to vector<8x16xf32>
    %13 = vector.extract_strided_slice %9 {offsets = [0, 16], sizes = [8, 16], strides = [1, 1]} : vector<8x192xf32> to vector<8x16xf32>
    %14 = vector.extract_strided_slice %9 {offsets = [0, 80], sizes = [8, 16], strides = [1, 1]} : vector<8x192xf32> to vector<8x16xf32>
    %15 = vector.extract_strided_slice %9 {offsets = [0, 144], sizes = [8, 16], strides = [1, 1]} : vector<8x192xf32> to vector<8x16xf32>
    %16 = vector.extract_strided_slice %9 {offsets = [0, 32], sizes = [8, 16], strides = [1, 1]} : vector<8x192xf32> to vector<8x16xf32>
    %17 = vector.extract_strided_slice %9 {offsets = [0, 96], sizes = [8, 16], strides = [1, 1]} : vector<8x192xf32> to vector<8x16xf32>
    %18 = vector.extract_strided_slice %9 {offsets = [0, 160], sizes = [8, 16], strides = [1, 1]} : vector<8x192xf32> to vector<8x16xf32>
    %19 = vector.extract_strided_slice %9 {offsets = [0, 48], sizes = [8, 16], strides = [1, 1]} : vector<8x192xf32> to vector<8x16xf32>
    %20 = vector.extract_strided_slice %9 {offsets = [0, 112], sizes = [8, 16], strides = [1, 1]} : vector<8x192xf32> to vector<8x16xf32>
    %21 = vector.extract_strided_slice %9 {offsets = [0, 176], sizes = [8, 16], strides = [1, 1]} : vector<8x192xf32> to vector<8x16xf32>
    %22 = tpu.concatenate %10, %13, %16, %19 in 0 : vector<8x16xf32>, vector<8x16xf32>, vector<8x16xf32>, vector<8x16xf32> -> vector<32x16xf32>
    %23 = tpu.concatenate %11, %14, %17, %20 in 0 : vector<8x16xf32>, vector<8x16xf32>, vector<8x16xf32>, vector<8x16xf32> -> vector<32x16xf32>
    %24 = tpu.concatenate %12, %15, %18, %21 in 0 : vector<8x16xf32>, vector<8x16xf32>, vector<8x16xf32>, vector<8x16xf32> -> vector<32x16xf32>
    %cst_10 = arith.constant dense<0.000000e+00> : vector<32x32xf32>
    %25 = tpu.matmul %22, %23, %cst_10 {dimension_numbers = #tpu.dot_dimension_numbers<[1], [1], [0], [0], [0, 0, 1, 0], [], []>} : vector<32x16xf32>, vector<32x16xf32>, vector<32x32xf32> -> vector<32x32xf32>
    %cst_11 = arith.constant 2.500000e-01 : f32
    %26 = vector.broadcast %cst_11 : f32 to vector<32x32xf32>
    %27 = arith.mulf %25, %26 : vector<32x32xf32>
    %c0_12 = arith.constant 0 : index
    %c0_13 = arith.constant 0 : index
    %28 = vector.load %arg6[%c0_12, %c0_13] : memref<32x32xf32, #tpu.memory_space<vmem>>, vector<32x32xf32>
    %29 = arith.addf %27, %28 : vector<32x32xf32>
    %cst_14 = arith.constant dense<0xFF800000> : vector<32xf32>
    %30 = vector.multi_reduction <maximumf>, %29, %cst_14 [1] : vector<32x32xf32> to vector<32xf32>
    %31 = vector.shape_cast %30 : vector<32xf32> to vector<32x1xf32>
    %32 = vector.broadcast %31 : vector<32x1xf32> to vector<32x32xf32>
    %33 = arith.subf %29, %32 : vector<32x32xf32>
    %34 = math.exp %33 : vector<32x32xf32>
    %cst_15 = arith.constant dense<0.000000e+00> : vector<32xf32>
    %35 = vector.multi_reduction <add>, %34, %cst_15 [1] : vector<32x32xf32> to vector<32xf32>
    %36 = vector.shape_cast %35 : vector<32xf32> to vector<32x1xf32>
    %37 = tpu.reciprocal %36 {approx = true} : vector<32x1xf32> -> vector<32x1xf32>
    %38 = vector.broadcast %37 : vector<32x1xf32> to vector<32x32xf32>
    %39 = arith.mulf %34, %38 : vector<32x32xf32>
    %cst_16 = arith.constant dense<0.000000e+00> : vector<32x16xf32>
    %40 = tpu.matmul %39, %24, %cst_16 {dimension_numbers = #tpu.dot_dimension_numbers<[1], [0], [0], [1], [0, 0, 1, 1], [], []>} : vector<32x32xf32>, vector<32x16xf32>, vector<32x16xf32> -> vector<32x16xf32>
    %c0_17 = arith.constant 0 : index
    %c0_18 = arith.constant 0 : index
    %c0_19 = arith.constant 0 : index
    %41 = vector.load %arg7[%c0_17, %c0_18, %c0_19] : memref<4x8x32xf32, #tpu.memory_space<vmem>>, vector<1x8x32xf32>
    %42 = vector.shape_cast %41 : vector<1x8x32xf32> to vector<8x32xf32>
    %cst_20 = arith.constant dense<0.000000e+00> : vector<8x16xf32>
    %43 = tpu.matmul %42, %40, %cst_20 {dimension_numbers = #tpu.dot_dimension_numbers<[1], [0], [0], [1], [0, 0, 1, 1], [], []>} : vector<8x32xf32>, vector<32x16xf32>, vector<8x16xf32> -> vector<8x16xf32>
    %c1 = arith.constant 1 : index
    %c0_21 = arith.constant 0 : index
    %c0_22 = arith.constant 0 : index
    %44 = vector.load %arg7[%c1, %c0_21, %c0_22] : memref<4x8x32xf32, #tpu.memory_space<vmem>>, vector<1x8x32xf32>
    %45 = vector.shape_cast %44 : vector<1x8x32xf32> to vector<8x32xf32>
    %cst_23 = arith.constant dense<0.000000e+00> : vector<8x16xf32>
    %46 = tpu.matmul %45, %40, %cst_23 {dimension_numbers = #tpu.dot_dimension_numbers<[1], [0], [0], [1], [0, 0, 1, 1], [], []>} : vector<8x32xf32>, vector<32x16xf32>, vector<8x16xf32> -> vector<8x16xf32>
    %c2 = arith.constant 2 : index
    %c0_24 = arith.constant 0 : index
    %c0_25 = arith.constant 0 : index
    %47 = vector.load %arg7[%c2, %c0_24, %c0_25] : memref<4x8x32xf32, #tpu.memory_space<vmem>>, vector<1x8x32xf32>
    %48 = vector.shape_cast %47 : vector<1x8x32xf32> to vector<8x32xf32>
    %cst_26 = arith.constant dense<0.000000e+00> : vector<8x16xf32>
    %49 = tpu.matmul %48, %40, %cst_26 {dimension_numbers = #tpu.dot_dimension_numbers<[1], [0], [0], [1], [0, 0, 1, 1], [], []>} : vector<8x32xf32>, vector<32x16xf32>, vector<8x16xf32> -> vector<8x16xf32>
    %c3 = arith.constant 3 : index
    %c0_27 = arith.constant 0 : index
    %c0_28 = arith.constant 0 : index
    %50 = vector.load %arg7[%c3, %c0_27, %c0_28] : memref<4x8x32xf32, #tpu.memory_space<vmem>>, vector<1x8x32xf32>
    %51 = vector.shape_cast %50 : vector<1x8x32xf32> to vector<8x32xf32>
    %cst_29 = arith.constant dense<0.000000e+00> : vector<8x16xf32>
    %52 = tpu.matmul %51, %40, %cst_29 {dimension_numbers = #tpu.dot_dimension_numbers<[1], [0], [0], [1], [0, 0, 1, 1], [], []>} : vector<8x32xf32>, vector<32x16xf32>, vector<8x16xf32> -> vector<8x16xf32>
    %53 = tpu.concatenate %43, %46, %49, %52 in 1 : vector<8x16xf32>, vector<8x16xf32>, vector<8x16xf32>, vector<8x16xf32> -> vector<8x64xf32>
    %c0_30 = arith.constant 0 : index
    %c0_31 = arith.constant 0 : index
    %54 = vector.load %arg8[%c0_30, %c0_31] : memref<64x64xf32, #tpu.memory_space<vmem>>, vector<64x64xf32>
    %cst_32 = arith.constant dense<0.000000e+00> : vector<8x64xf32>
    %55 = tpu.matmul %53, %54, %cst_32 {dimension_numbers = #tpu.dot_dimension_numbers<[1], [0], [0], [1], [0, 0, 1, 1], [], []>} : vector<8x64xf32>, vector<64x64xf32>, vector<8x64xf32> -> vector<8x64xf32>
    %56 = arith.addf %55, %7 : vector<8x64xf32>
    %c0_33 = arith.constant 0 : index
    %c0_34 = arith.constant 0 : index
    %57 = vector.load %arg9[%c0_33, %c0_34] : memref<1x64xf32, #tpu.memory_space<vmem>>, vector<1x64xf32>
    %c0_35 = arith.constant 0 : index
    %c0_36 = arith.constant 0 : index
    %58 = vector.load %arg10[%c0_35, %c0_36] : memref<1x64xf32, #tpu.memory_space<vmem>>, vector<1x64xf32>
    %cst_37 = arith.constant dense<0.000000e+00> : vector<8xf32>
    %59 = vector.multi_reduction <add>, %56, %cst_37 [1] : vector<8x64xf32> to vector<8xf32>
    %60 = vector.shape_cast %59 : vector<8xf32> to vector<8x1xf32>
    %cst_38 = arith.constant 6.400000e+01 : f32
    %61 = vector.broadcast %cst_38 : f32 to vector<8x1xf32>
    %62 = arith.divf %60, %61 : vector<8x1xf32>
    %63 = vector.broadcast %62 : vector<8x1xf32> to vector<8x64xf32>
    %64 = arith.subf %56, %63 : vector<8x64xf32>
    %65 = arith.mulf %64, %64 : vector<8x64xf32>
    %cst_39 = arith.constant dense<0.000000e+00> : vector<8xf32>
    %66 = vector.multi_reduction <add>, %65, %cst_39 [1] : vector<8x64xf32> to vector<8xf32>
    %67 = vector.shape_cast %66 : vector<8xf32> to vector<8x1xf32>
    %cst_40 = arith.constant 6.400000e+01 : f32
    %68 = vector.broadcast %cst_40 : f32 to vector<8x1xf32>
    %69 = arith.divf %67, %68 : vector<8x1xf32>
    %70 = vector.broadcast %62 : vector<8x1xf32> to vector<8x64xf32>
    %71 = arith.subf %56, %70 : vector<8x64xf32>
    %cst_41 = arith.constant 9.99999974E-6 : f32
    %72 = vector.broadcast %cst_41 : f32 to vector<8x1xf32>
    %73 = arith.addf %69, %72 : vector<8x1xf32>
    %74 = math.rsqrt %73 : vector<8x1xf32>
    %75 = vector.broadcast %74 : vector<8x1xf32> to vector<8x64xf32>
    %76 = arith.mulf %71, %75 : vector<8x64xf32>
    %77 = vector.broadcast %57 : vector<1x64xf32> to vector<8x64xf32>
    %78 = arith.mulf %76, %77 : vector<8x64xf32>
    %79 = vector.broadcast %58 : vector<1x64xf32> to vector<8x64xf32>
    %80 = arith.addf %78, %79 : vector<8x64xf32>
    %c0_42 = arith.constant 0 : index
    %c0_43 = arith.constant 0 : index
    %81 = vector.load %arg11[%c0_42, %c0_43] : memref<64x256xf32, #tpu.memory_space<vmem>>, vector<64x256xf32>
    %cst_44 = arith.constant dense<0.000000e+00> : vector<8x256xf32>
    %82 = tpu.matmul %80, %81, %cst_44 {dimension_numbers = #tpu.dot_dimension_numbers<[1], [0], [0], [1], [0, 0, 1, 1], [], []>} : vector<8x64xf32>, vector<64x256xf32>, vector<8x256xf32> -> vector<8x256xf32>
    %c0_45 = arith.constant 0 : index
    %c0_46 = arith.constant 0 : index
    %83 = vector.load %arg12[%c0_45, %c0_46] : memref<1x256xf32, #tpu.memory_space<vmem>>, vector<1x256xf32>
    %84 = vector.broadcast %83 : vector<1x256xf32> to vector<8x256xf32>
    %85 = arith.addf %82, %84 : vector<8x256xf32>
    %cst_47 = arith.constant 0.000000e+00 : f32
    %86 = vector.broadcast %cst_47 : f32 to vector<8x256xf32>
    %87 = arith.maximumf %85, %86 : vector<8x256xf32>
    %c0_48 = arith.constant 0 : index
    %c0_49 = arith.constant 0 : index
    %88 = vector.load %arg13[%c0_48, %c0_49] : memref<256x64xf32, #tpu.memory_space<vmem>>, vector<256x64xf32>
    %cst_50 = arith.constant dense<0.000000e+00> : vector<8x64xf32>
    %89 = tpu.matmul %87, %88, %cst_50 {dimension_numbers = #tpu.dot_dimension_numbers<[1], [0], [0], [1], [0, 0, 1, 1], [], []>} : vector<8x256xf32>, vector<256x64xf32>, vector<8x64xf32> -> vector<8x64xf32>
    %c0_51 = arith.constant 0 : index
    %c0_52 = arith.constant 0 : index
    %90 = vector.load %arg14[%c0_51, %c0_52] : memref<1x64xf32, #tpu.memory_space<vmem>>, vector<1x64xf32>
    %91 = vector.broadcast %90 : vector<1x64xf32> to vector<8x64xf32>
    %92 = arith.addf %89, %91 : vector<8x64xf32>
    %93 = arith.addf %92, %80 : vector<8x64xf32>
    %c0_53 = arith.constant 0 : index
    %c0_54 = arith.constant 0 : index
    %94 = vector.load %arg15[%c0_53, %c0_54] : memref<1x64xf32, #tpu.memory_space<vmem>>, vector<1x64xf32>
    %c0_55 = arith.constant 0 : index
    %c0_56 = arith.constant 0 : index
    %95 = vector.load %arg16[%c0_55, %c0_56] : memref<1x64xf32, #tpu.memory_space<vmem>>, vector<1x64xf32>
    %cst_57 = arith.constant dense<0.000000e+00> : vector<8xf32>
    %96 = vector.multi_reduction <add>, %93, %cst_57 [1] : vector<8x64xf32> to vector<8xf32>
    %97 = vector.shape_cast %96 : vector<8xf32> to vector<8x1xf32>
    %cst_58 = arith.constant 6.400000e+01 : f32
    %98 = vector.broadcast %cst_58 : f32 to vector<8x1xf32>
    %99 = arith.divf %97, %98 : vector<8x1xf32>
    %100 = vector.broadcast %99 : vector<8x1xf32> to vector<8x64xf32>
    %101 = arith.subf %93, %100 : vector<8x64xf32>
    %102 = arith.mulf %101, %101 : vector<8x64xf32>
    %cst_59 = arith.constant dense<0.000000e+00> : vector<8xf32>
    %103 = vector.multi_reduction <add>, %102, %cst_59 [1] : vector<8x64xf32> to vector<8xf32>
    %104 = vector.shape_cast %103 : vector<8xf32> to vector<8x1xf32>
    %cst_60 = arith.constant 6.400000e+01 : f32
    %105 = vector.broadcast %cst_60 : f32 to vector<8x1xf32>
    %106 = arith.divf %104, %105 : vector<8x1xf32>
    %107 = vector.broadcast %99 : vector<8x1xf32> to vector<8x64xf32>
    %108 = arith.subf %93, %107 : vector<8x64xf32>
    %cst_61 = arith.constant 9.99999974E-6 : f32
    %109 = vector.broadcast %cst_61 : f32 to vector<8x1xf32>
    %110 = arith.addf %106, %109 : vector<8x1xf32>
    %111 = math.rsqrt %110 : vector<8x1xf32>
    %112 = vector.broadcast %111 : vector<8x1xf32> to vector<8x64xf32>
    %113 = arith.mulf %108, %112 : vector<8x64xf32>
    %114 = vector.broadcast %94 : vector<1x64xf32> to vector<8x64xf32>
    %115 = arith.mulf %113, %114 : vector<8x64xf32>
    %116 = vector.broadcast %95 : vector<1x64xf32> to vector<8x64xf32>
    %117 = arith.addf %115, %116 : vector<8x64xf32>
    %c0_62 = arith.constant 0 : index
    %c0_63 = arith.constant 0 : index
    %c0_64 = arith.constant 0 : index
    %118 = vector.load %arg17[%c0_62, %c0_63, %c0_64] : memref<8x4x2xf32, #tpu.memory_space<vmem>>, vector<8x4x2xf32>
    %cst_65 = arith.constant 0.000000e+00 : f32
    %119 = vector.broadcast %cst_65 : f32 to vector<8x2xf32>
    %120 = vector.extract_strided_slice %117 {offsets = [0, 0], sizes = [8, 16], strides = [1, 1]} : vector<8x64xf32> to vector<8x16xf32>
    %cst_66 = arith.constant dense<0xFF800000> : vector<8xf32>
    %121 = vector.multi_reduction <maximumf>, %120, %cst_66 [1] : vector<8x16xf32> to vector<8xf32>
    %122 = vector.shape_cast %121 : vector<8xf32> to vector<8x1xf32>
    %123 = vector.extract_strided_slice %118 {offsets = [0, 0, 0], sizes = [8, 1, 2], strides = [1, 1, 1]} : vector<8x4x2xf32> to vector<8x1x2xf32>
    %124 = vector.shape_cast %123 : vector<8x1x2xf32> to vector<8x2xf32>
    %125 = vector.broadcast %122 : vector<8x1xf32> to vector<8x2xf32>
    %126 = arith.mulf %125, %124 : vector<8x2xf32>
    %127 = arith.addf %119, %126 : vector<8x2xf32>
    %128 = vector.extract_strided_slice %117 {offsets = [0, 16], sizes = [8, 16], strides = [1, 1]} : vector<8x64xf32> to vector<8x16xf32>
    %cst_67 = arith.constant dense<0xFF800000> : vector<8xf32>
    %129 = vector.multi_reduction <maximumf>, %128, %cst_67 [1] : vector<8x16xf32> to vector<8xf32>
    %130 = vector.shape_cast %129 : vector<8xf32> to vector<8x1xf32>
    %131 = vector.extract_strided_slice %118 {offsets = [0, 1, 0], sizes = [8, 1, 2], strides = [1, 1, 1]} : vector<8x4x2xf32> to vector<8x1x2xf32>
    %132 = vector.shape_cast %131 : vector<8x1x2xf32> to vector<8x2xf32>
    %133 = vector.broadcast %130 : vector<8x1xf32> to vector<8x2xf32>
    %134 = arith.mulf %133, %132 : vector<8x2xf32>
    %135 = arith.addf %127, %134 : vector<8x2xf32>
    %136 = vector.extract_strided_slice %117 {offsets = [0, 32], sizes = [8, 16], strides = [1, 1]} : vector<8x64xf32> to vector<8x16xf32>
    %cst_68 = arith.constant dense<0xFF800000> : vector<8xf32>
    %137 = vector.multi_reduction <maximumf>, %136, %cst_68 [1] : vector<8x16xf32> to vector<8xf32>
    %138 = vector.shape_cast %137 : vector<8xf32> to vector<8x1xf32>
    %139 = vector.extract_strided_slice %118 {offsets = [0, 2, 0], sizes = [8, 1, 2], strides = [1, 1, 1]} : vector<8x4x2xf32> to vector<8x1x2xf32>
    %140 = vector.shape_cast %139 : vector<8x1x2xf32> to vector<8x2xf32>
    %141 = vector.broadcast %138 : vector<8x1xf32> to vector<8x2xf32>
    %142 = arith.mulf %141, %140 : vector<8x2xf32>
    %143 = arith.addf %135, %142 : vector<8x2xf32>
    %144 = vector.extract_strided_slice %117 {offsets = [0, 48], sizes = [8, 16], strides = [1, 1]} : vector<8x64xf32> to vector<8x16xf32>
    %cst_69 = arith.constant dense<0xFF800000> : vector<8xf32>
    %145 = vector.multi_reduction <maximumf>, %144, %cst_69 [1] : vector<8x16xf32> to vector<8xf32>
    %146 = vector.shape_cast %145 : vector<8xf32> to vector<8x1xf32>
    %147 = vector.extract_strided_slice %118 {offsets = [0, 3, 0], sizes = [8, 1, 2], strides = [1, 1, 1]} : vector<8x4x2xf32> to vector<8x1x2xf32>
    %148 = vector.shape_cast %147 : vector<8x1x2xf32> to vector<8x2xf32>
    %149 = vector.broadcast %146 : vector<8x1xf32> to vector<8x2xf32>
    %150 = arith.mulf %149, %148 : vector<8x2xf32>
    %151 = arith.addf %143, %150 : vector<8x2xf32>
    %c0_70 = arith.constant 0 : index
    %c0_71 = arith.constant 0 : index
    %152 = vector.load %arg19[%c0_70, %c0_71] : memref<1x8xf32, #tpu.memory_space<vmem>>, vector<1x8xf32>
    %cst_72 = arith.constant dense<0.000000e+00> : vector<1x2xf32>
    %153 = tpu.matmul %152, %151, %cst_72 {dimension_numbers = #tpu.dot_dimension_numbers<[1], [0], [0], [1], [0, 0, 1, 1], [], []>} : vector<1x8xf32>, vector<8x2xf32>, vector<1x2xf32> -> vector<1x2xf32>
    %c0_73 = arith.constant 0 : index
    %c0_74 = arith.constant 0 : index
    %154 = vector.load %arg18[%c0_73, %c0_74] : memref<1x2xf32, #tpu.memory_space<vmem>>, vector<1x2xf32>
    %155 = arith.addf %153, %154 : vector<1x2xf32>
    %cst_75 = arith.constant dense<0xFF800000> : vector<1xf32>
    %156 = vector.multi_reduction <maximumf>, %155, %cst_75 [1] : vector<1x2xf32> to vector<1xf32>
    %157 = vector.shape_cast %156 : vector<1xf32> to vector<1x1xf32>
    %158 = vector.broadcast %157 : vector<1x1xf32> to vector<1x2xf32>
    %159 = arith.subf %155, %158 : vector<1x2xf32>
    %160 = math.exp %159 : vector<1x2xf32>
    %cst_76 = arith.constant dense<0.000000e+00> : vector<1xf32>
    %161 = vector.multi_reduction <add>, %160, %cst_76 [1] : vector<1x2xf32> to vector<1xf32>
    %162 = vector.shape_cast %161 : vector<1xf32> to vector<1x1xf32>
    %163 = math.log %162 : vector<1x1xf32>
    %164 = vector.broadcast %163 : vector<1x1xf32> to vector<1x2xf32>
    %165 = arith.subf %159, %164 : vector<1x2xf32>
    %166 = vector.shape_cast %165 : vector<1x2xf32> to vector<1x1x2xf32>
    %c0_77 = arith.constant 0 : index
    %c0_78 = arith.constant 0 : index
    %c0_79 = arith.constant 0 : index
    %167 = vector.load %arg20[%c0_77, %c0_78, %c0_79] : memref<1x1x2xf32, #tpu.memory_space<vmem>>, vector<1x1x2xf32>
    tpu.vector_store %arg20[%c0_77, %c0_78, %c0_79], %166 {strides = array<i32>} : memref<1x1x2xf32, #tpu.memory_space<vmem>>, vector<1x1x2xf32>,
    return
  }
  func.func @transform_0(%arg0: i32) -> (i32, i32) {
    %c0_i32 = arith.constant 0 : i32
    %c0_i32_0 = arith.constant 0 : i32
    return %arg0, %c0_i32 : i32, i32
  }
  func.func @transform_1(%arg0: i32) -> (i32, i32) {
    %c0_i32 = arith.constant 0 : i32
    %c0_i32_0 = arith.constant 0 : i32
    %c0_i32_1 = arith.constant 0 : i32
    return %c0_i32, %c0_i32_0 : i32, i32
  }
  func.func @transform_2(%arg0: i32) -> (i32, i32) {
    %c0_i32 = arith.constant 0 : i32
    %c0_i32_0 = arith.constant 0 : i32
    %c0_i32_1 = arith.constant 0 : i32
    return %c0_i32, %c0_i32_0 : i32, i32
  }
  func.func @transform_3(%arg0: i32) -> (i32, i32) {
    %c0_i32 = arith.constant 0 : i32
    %c0_i32_0 = arith.constant 0 : i32
    %c0_i32_1 = arith.constant 0 : i32
    return %c0_i32, %c0_i32_0 : i32, i32
  }
  func.func @transform_4(%arg0: i32) -> (i32, i32) {
    %c0_i32 = arith.constant 0 : i32
    %c0_i32_0 = arith.constant 0 : i32
    %c0_i32_1 = arith.constant 0 : i32
    return %c0_i32, %c0_i32_0 : i32, i32
  }
  func.func @transform_5(%arg0: i32) -> (i32, i32) {
    %c0_i32 = arith.constant 0 : i32
    %c0_i32_0 = arith.constant 0 : i32
    %c0_i32_1 = arith.constant 0 : i32
    return %c0_i32, %c0_i32_0 : i32, i32
  }
  func.func @transform_6(%arg0: i32) -> (i32, i32, i32) {
    %c0_i32 = arith.constant 0 : i32
    %c0_i32_0 = arith.constant 0 : i32
    %c0_i32_1 = arith.constant 0 : i32
    %c0_i32_2 = arith.constant 0 : i32
    return %c0_i32, %c0_i32_0, %c0_i32_1 : i32, i32, i32
  }
  func.func @transform_7(%arg0: i32) -> (i32, i32) {
    %c0_i32 = arith.constant 0 : i32
    %c0_i32_0 = arith.constant 0 : i32
    %c0_i32_1 = arith.constant 0 : i32
    return %c0_i32, %c0_i32_0 : i32, i32
  }
  func.func @transform_8(%arg0: i32) -> (i32, i32) {
    %c0_i32 = arith.constant 0 : i32
    %c0_i32_0 = arith.constant 0 : i32
    %c0_i32_1 = arith.constant 0 : i32
    return %c0_i32, %c0_i32_0 : i32, i32
  }
  func.func @transform_9(%arg0: i32) -> (i32, i32) {
    %c0_i32 = arith.constant 0 : i32
    %c0_i32_0 = arith.constant 0 : i32
    %c0_i32_1 = arith.constant 0 : i32
    return %c0_i32, %c0_i32_0 : i32, i32
  }
  func.func @transform_10(%arg0: i32) -> (i32, i32) {
    %c0_i32 = arith.constant 0 : i32
    %c0_i32_0 = arith.constant 0 : i32
    %c0_i32_1 = arith.constant 0 : i32
    return %c0_i32, %c0_i32_0 : i32, i32
  }
  func.func @transform_11(%arg0: i32) -> (i32, i32) {
    %c0_i32 = arith.constant 0 : i32
    %c0_i32_0 = arith.constant 0 : i32
    %c0_i32_1 = arith.constant 0 : i32
    return %c0_i32, %c0_i32_0 : i32, i32
  }
  func.func @transform_12(%arg0: i32) -> (i32, i32) {
    %c0_i32 = arith.constant 0 : i32
    %c0_i32_0 = arith.constant 0 : i32
    %c0_i32_1 = arith.constant 0 : i32
    return %c0_i32, %c0_i32_0 : i32, i32
  }
  func.func @transform_13(%arg0: i32) -> (i32, i32) {
    %c0_i32 = arith.constant 0 : i32
    %c0_i32_0 = arith.constant 0 : i32
    %c0_i32_1 = arith.constant 0 : i32
    return %c0_i32, %c0_i32_0 : i32, i32
  }
  func.func @transform_14(%arg0: i32) -> (i32, i32) {
    %c0_i32 = arith.constant 0 : i32
    %c0_i32_0 = arith.constant 0 : i32
    %c0_i32_1 = arith.constant 0 : i32
    return %c0_i32, %c0_i32_0 : i32, i32
  }
  func.func @transform_15(%arg0: i32) -> (i32, i32) {
    %c0_i32 = arith.constant 0 : i32
    %c0_i32_0 = arith.constant 0 : i32
    %c0_i32_1 = arith.constant 0 : i32
    return %c0_i32, %c0_i32_0 : i32, i32
  }
  func.func @transform_16(%arg0: i32) -> (i32, i32, i32) {
    %c0_i32 = arith.constant 0 : i32
    %c0_i32_0 = arith.constant 0 : i32
    %c0_i32_1 = arith.constant 0 : i32
    %c0_i32_2 = arith.constant 0 : i32
    return %c0_i32, %c0_i32_0, %c0_i32_1 : i32, i32, i32
  }
  func.func @transform_17(%arg0: i32) -> (i32, i32) {
    %c0_i32 = arith.constant 0 : i32
    %c0_i32_0 = arith.constant 0 : i32
    %c0_i32_1 = arith.constant 0 : i32
    return %c0_i32, %c0_i32_0 : i32, i32
  }
  func.func @transform_18(%arg0: i32) -> (i32, i32) {
    %c0_i32 = arith.constant 0 : i32
    %c0_i32_0 = arith.constant 0 : i32
    %c0_i32_1 = arith.constant 0 : i32
    return %c0_i32, %c0_i32_0 : i32, i32
  }
  func.func @transform_19(%arg0: i32) -> (i32, i32, i32) {
    %c0_i32 = arith.constant 0 : i32
    %c0_i32_0 = arith.constant 0 : i32
    %c0_i32_1 = arith.constant 0 : i32
    return %arg0, %c0_i32, %c0_i32_0 : i32, i32, i32
  }
}

</mosaic_0001>

<llo_original>
// kernel: tpu_custom_call.1
$region0: #{tpu_custom_call.1}
  #allocation0 [shape = 'u32[]', space=smem, size = 0x4, offset = 0x4, fixed_abs, tag = 'smem constant byte address 0x4 - core index']
  #allocation1 [shape = 'u32[144,128]{1,0:T(1,128)}', space=vmem, size = 0x12000, scoped, tag = 'internal scratch']
  %s0 = inlined_call_operand.hbm [shape: f32[16,32], index: 0, kind: input, shape index: {}]
  %s1 = inlined_call_operand.vmem [shape: f32[32,64], index: 1, kind: input, shape index: {}]
  %s2 = inlined_call_operand.vmem [shape: f32[1,64], index: 2, kind: input, shape index: {}]
  %s3 = inlined_call_operand.vmem [shape: f32[8,64], index: 3, kind: input, shape index: {}]
  %s4 = inlined_call_operand.vmem [shape: f32[64,192], index: 4, kind: input, shape index: {}]
  %s5 = inlined_call_operand.vmem [shape: f32[32,32], index: 5, kind: input, shape index: {}]
  %s6 = inlined_call_operand.vmem [shape: f32[4,8,32], index: 6, kind: input, shape index: {}]
  %s7 = inlined_call_operand.vmem [shape: f32[64,64], index: 7, kind: input, shape index: {}]
  %s8 = inlined_call_operand.vmem [shape: f32[1,64], index: 8, kind: input, shape index: {}]
  %s9 = inlined_call_operand.vmem [shape: f32[1,64], index: 9, kind: input, shape index: {}]
  %s10 = inlined_call_operand.vmem [shape: f32[64,256], index: 10, kind: input, shape index: {}]
  %s11 = inlined_call_operand.vmem [shape: f32[1,256], index: 11, kind: input, shape index: {}]
  %s12 = inlined_call_operand.vmem [shape: f32[256,64], index: 12, kind: input, shape index: {}]
  %s13 = inlined_call_operand.vmem [shape: f32[1,64], index: 13, kind: input, shape index: {}]
  %s14 = inlined_call_operand.vmem [shape: f32[1,64], index: 14, kind: input, shape index: {}]
  %s15 = inlined_call_operand.vmem [shape: f32[1,64], index: 15, kind: input, shape index: {}]
  %s16 = inlined_call_operand.vmem [shape: f32[8,4,2], index: 16, kind: input, shape index: {}]
  %s17 = inlined_call_operand.vmem [shape: f32[1,2], index: 17, kind: input, shape index: {}]
  %s18 = inlined_call_operand.vmem [shape: f32[1,8], index: 18, kind: input, shape index: {}]
  %s19 = inlined_call_operand.hbm [shape: f32[2,1,2], index: 19, kind: output, shape index: {}]
  %s20 = sld [smem:[#allocation0]]
  $region113: #{tpu_custom_call.1} parent=0
    _
  %s22 = ssub.s32 1, %s20
  %s23 = scalar_select 0, %s22, %s20
  $region1: #{tpu_custom_call.1} parent=0
    #allocation2 [shape = 'u8[8192]{0}', space=vmem, size = 0x2000, scoped, tag = 'input window, operand 0']
    #allocation3 [shape = 's32[2]{0}', space=sflag, size = 0x8, scoped, tag = 'scoped memory for tpu_custom_call.1']
    #allocation4 [shape = 's32[2]{0}', space=sflag, size = 0x8, scoped, tag = 'scoped memory for tpu_custom_call.1']
    #allocation5 [shape = 'u8[1024]{0}', space=vmem, size = 0x400, scoped, tag = 'output window, operand 0']
    %24 = vsyncpa [#allocation3], 0
    %s25 = scalar_lea.sflag [#allocation3], 1
    %26 = vsyncpa %s25, 0
    %27 = vsyncpa [#allocation4], 0
    %s28 = scalar_lea.sflag [#allocation4], 1
    %29 = vsyncpa %s28, 0
    loop: start=0, step=1, limit=4
    $region2: #{tpu_custom_call.1} parent=1 // loop_pre_header
      _
    $region3: #{tpu_custom_call.1} parent=1 // loop_header
      %s31 = sphi 0, %s35
      %p32 = scmp.ge.s32.totalorder %s31, 4
      %s41 = sphi 0, %s43
      %s44 = sphi 0, %s41
      %s45 = sphi 0, %s44
      %s61 = sphi 0, %s45
      %s65 = sphi 0, %s65
      %s67 = sphi 0, %s65
      %s68 = sphi 0, %s67
      %s82 = sphi 0, %s68
      %s86 = sphi 0, %s86
      %s88 = sphi 0, %s86
      %s89 = sphi 0, %s88
      %s103 = sphi 0, %s89
      %s107 = sphi 0, %s107
      %s109 = sphi 0, %s107
      %s110 = sphi 0, %s109
      %s124 = sphi 0, %s110
      %s128 = sphi 0, %s128
      %s130 = sphi 0, %s128
      %s131 = sphi 0, %s130
      %s145 = sphi 0, %s131
      %s149 = sphi 0, %s149
      %s151 = sphi 0, %s149
      %s152 = sphi 0, %s151
      %s166 = sphi 0, %s152
      %s170 = sphi 0, %s170
      %s172 = sphi 0, %s170
      %s173 = sphi 0, %s172
      %s187 = sphi 0, %s173
      %s191 = sphi 0, %s191
      %s193 = sphi 0, %s191
      %s194 = sphi 0, %s193
      %s208 = sphi 0, %s194
      %s212 = sphi 0, %s212
      %s214 = sphi 0, %s212
      %s215 = sphi 0, %s214
      %s229 = sphi 0, %s215
      %s233 = sphi 0, %s233
      %s235 = sphi 0, %s233
      %s236 = sphi 0, %s235
      %s250 = sphi 0, %s236
      %s254 = sphi 0, %s254
      %s256 = sphi 0, %s254
      %s257 = sphi 0, %s256
      %s271 = sphi 0, %s257
      %s275 = sphi 0, %s275
      %s277 = sphi 0, %s275
      %s278 = sphi 0, %s277
      %s292 = sphi 0, %s278
      %s296 = sphi 0, %s296
      %s298 = sphi 0, %s296
      %s299 = sphi 0, %s298
      %s313 = sphi 0, %s299
      %s317 = sphi 0, %s317
      %s319 = sphi 0, %s317
      %s320 = sphi 0, %s319
      %s334 = sphi 0, %s320
      %s338 = sphi 0, %s338
      %s340 = sphi 0, %s338
      %s341 = sphi 0, %s340
      %s355 = sphi 0, %s341
      %s359 = sphi 0, %s359
      %s361 = sphi 0, %s359
      %s362 = sphi 0, %s361
      %s376 = sphi 0, %s362
      %s380 = sphi 0, %s380
      %s382 = sphi 0, %s380
      %s383 = sphi 0, %s382
      %s397 = sphi 0, %s383
      %s401 = sphi 0, %s401
      %s403 = sphi 0, %s401
      %s404 = sphi 0, %s403
      %s418 = sphi 0, %s404
      %s422 = sphi 0, %s422
      %s424 = sphi 0, %s422
      %s425 = sphi 0, %s424
      %s439 = sphi 0, %s425
      %s445 = sphi 0, %s447
      %s448 = sphi 0, %s445
      %s449 = sphi 0, %s448
      %s465 = sphi 0, %s449
    $region4: #{tpu_custom_call.1} parent=1 // loop_header_branch
      %34 = sbr.rel (%p32) target = $region8
    $region5: #{tpu_custom_call.1} parent=1 // loop_body
      %s36 = ssub.s32 %s31, 1
      %s37 = ssub.s32 %s31, 2
      %s38 = sadd.s32 %s31, 1
      %s39 = ssub.s32 %s31, %s38
      %p40 = scmp.eq.s32.totalorder %s39, 0
      %s42 = sadd.s32 %s41, 1
      %s43 = scalar_select %p40, %s41, %s42
      %p46 = pneg %p40
      %p47 = scmp.eq.s32.totalorder %s31, 1
      %p48 = por %p46, %p47
      %p49 = scmp.ne.s32.totalorder %s41, %s44
      %p50 = scmp.eq.s32.totalorder %s31, 0
      %p51 = por %p49, %p50
      %p52 = scmp.ne.s32.totalorder %s41, %s44
      %p53 = scmp.eq.s32.totalorder %s36, 1
      %p54 = por %p52, %p53
      %p55 = scmp.ne.s32.totalorder %s44, %s45
      %p56 = scmp.eq.s32.totalorder %s36, 0
      %p57 = por %p55, %p56
      %p58 = scmp.ne.s32.totalorder %s44, %s45
      %p59 = scmp.eq.s32.totalorder %s37, 1
      %p60 = por %p58, %p59
      %p62 = scmp.ne.s32.totalorder %s45, %s61
      %p63 = scmp.eq.s32.totalorder %s37, 0
      %p64 = por %p62, %p63
      %s66 = sadd.s32 %s65, 1
      %p69 = scmp.eq.s32.totalorder %s31, 1
      %p70 = scmp.ne.s32.totalorder %s65, %s67
      %p71 = scmp.eq.s32.totalorder %s31, 0
      %p72 = por %p70, %p71
      %p73 = scmp.ne.s32.totalorder %s65, %s67
      %p74 = scmp.eq.s32.totalorder %s36, 1
      %p75 = por %p73, %p74
      %p76 = scmp.ne.s32.totalorder %s67, %s68
      %p77 = scmp.eq.s32.totalorder %s36, 0
      %p78 = por %p76, %p77
      %p79 = scmp.ne.s32.totalorder %s67, %s68
      %p80 = scmp.eq.s32.totalorder %s37, 1
      %p81 = por %p79, %p80
      %p83 = scmp.ne.s32.totalorder %s68, %s82
      %p84 = scmp.eq.s32.totalorder %s37, 0
      %p85 = por %p83, %p84
      %s87 = sadd.s32 %s86, 1
      %p90 = scmp.eq.s32.totalorder %s31, 1
      %p91 = scmp.ne.s32.totalorder %s86, %s88
      %p92 = scmp.eq.s32.totalorder %s31, 0
      %p93 = por %p91, %p92
      %p94 = scmp.ne.s32.totalorder %s86, %s88
      %p95 = scmp.eq.s32.totalorder %s36, 1
      %p96 = por %p94, %p95
      %p97 = scmp.ne.s32.totalorder %s88, %s89
      %p98 = scmp.eq.s32.totalorder %s36, 0
      %p99 = por %p97, %p98
      %p100 = scmp.ne.s32.totalorder %s88, %s89
      %p101 = scmp.eq.s32.totalorder %s37, 1
      %p102 = por %p100, %p101
      %p104 = scmp.ne.s32.totalorder %s89, %s103
      %p105 = scmp.eq.s32.totalorder %s37, 0
      %p106 = por %p104, %p105
      %s108 = sadd.s32 %s107, 1
      %p111 = scmp.eq.s32.totalorder %s31, 1
      %p112 = scmp.ne.s32.totalorder %s107, %s109
      %p113 = scmp.eq.s32.totalorder %s31, 0
      %p114 = por %p112, %p113
      %p115 = scmp.ne.s32.totalorder %s107, %s109
      %p116 = scmp.eq.s32.totalorder %s36, 1
      %p117 = por %p115, %p116
      %p118 = scmp.ne.s32.totalorder %s109, %s110
      %p119 = scmp.eq.s32.totalorder %s36, 0
      %p120 = por %p118, %p119
      %p121 = scmp.ne.s32.totalorder %s109, %s110
      %p122 = scmp.eq.s32.totalorder %s37, 1
      %p123 = por %p121, %p122
      %p125 = scmp.ne.s32.totalorder %s110, %s124
      %p126 = scmp.eq.s32.totalorder %s37, 0
      %p127 = por %p125, %p126
      %s129 = sadd.s32 %s128, 1
      %p132 = scmp.eq.s32.totalorder %s31, 1
      %p133 = scmp.ne.s32.totalorder %s128, %s130
      %p134 = scmp.eq.s32.totalorder %s31, 0
      %p135 = por %p133, %p134
      %p136 = scmp.ne.s32.totalorder %s128, %s130
      %p137 = scmp.eq.s32.totalorder %s36, 1
      %p138 = por %p136, %p137
      %p139 = scmp.ne.s32.totalorder %s130, %s131
      %p140 = scmp.eq.s32.totalorder %s36, 0
      %p141 = por %p139, %p140
      %p142 = scmp.ne.s32.totalorder %s130, %s131
      %p143 = scmp.eq.s32.totalorder %s37, 1
      %p144 = por %p142, %p143
      %p146 = scmp.ne.s32.totalorder %s131, %s145
      %p147 = scmp.eq.s32.totalorder %s37, 0
      %p148 = por %p146, %p147
      %s150 = sadd.s32 %s149, 1
      %p153 = scmp.eq.s32.totalorder %s31, 1
      %p154 = scmp.ne.s32.totalorder %s149, %s151
      %p155 = scmp.eq.s32.totalorder %s31, 0
      %p156 = por %p154, %p155
      %p157 = scmp.ne.s32.totalorder %s149, %s151
      %p158 = scmp.eq.s32.totalorder %s36, 1
      %p159 = por %p157, %p158
      %p160 = scmp.ne.s32.totalorder %s151, %s152
      %p161 = scmp.eq.s32.totalorder %s36, 0
      %p162 = por %p160, %p161
      %p163 = scmp.ne.s32.totalorder %s151, %s152
      %p164 = scmp.eq.s32.totalorder %s37, 1
      %p165 = por %p163, %p164
      %p167 = scmp.ne.s32.totalorder %s152, %s166
      %p168 = scmp.eq.s32.totalorder %s37, 0
      %p169 = por %p167, %p168
      %s171 = sadd.s32 %s170, 1
      %p174 = scmp.eq.s32.totalorder %s31, 1
      %p175 = scmp.ne.s32.totalorder %s170, %s172
      %p176 = scmp.eq.s32.totalorder %s31, 0
      %p177 = por %p175, %p176
      %p178 = scmp.ne.s32.totalorder %s170, %s172
      %p179 = scmp.eq.s32.totalorder %s36, 1
      %p180 = por %p178, %p179
      %p181 = scmp.ne.s32.totalorder %s172, %s173
      %p182 = scmp.eq.s32.totalorder %s36, 0
      %p183 = por %p181, %p182
      %p184 = scmp.ne.s32.totalorder %s172, %s173
      %p185 = scmp.eq.s32.totalorder %s37, 1
      %p186 = por %p184, %p185
      %p188 = scmp.ne.s32.totalorder %s173, %s187
      %p189 = scmp.eq.s32.totalorder %s37, 0
      %p190 = por %p188, %p189
      %s192 = sadd.s32 %s191, 1
      %p195 = scmp.eq.s32.totalorder %s31, 1
      %p196 = scmp.ne.s32.totalorder %s191, %s193
      %p197 = scmp.eq.s32.totalorder %s31, 0
      %p198 = por %p196, %p197
      %p199 = scmp.ne.s32.totalorder %s191, %s193
      %p200 = scmp.eq.s32.totalorder %s36, 1
      %p201 = por %p199, %p200
      %p202 = scmp.ne.s32.totalorder %s193, %s194
      %p203 = scmp.eq.s32.totalorder %s36, 0
      %p204 = por %p202, %p203
      %p205 = scmp.ne.s32.totalorder %s193, %s194
      %p206 = scmp.eq.s32.totalorder %s37, 1
      %p207 = por %p205, %p206
      %p209 = scmp.ne.s32.totalorder %s194, %s208
      %p210 = scmp.eq.s32.totalorder %s37, 0
      %p211 = por %p209, %p210
      %s213 = sadd.s32 %s212, 1
      %p216 = scmp.eq.s32.totalorder %s31, 1
      %p217 = scmp.ne.s32.totalorder %s212, %s214
      %p218 = scmp.eq.s32.totalorder %s31, 0
      %p219 = por %p217, %p218
      %p220 = scmp.ne.s32.totalorder %s212, %s214
      %p221 = scmp.eq.s32.totalorder %s36, 1
      %p222 = por %p220, %p221
      %p223 = scmp.ne.s32.totalorder %s214, %s215
      %p224 = scmp.eq.s32.totalorder %s36, 0
      %p225 = por %p223, %p224
      %p226 = scmp.ne.s32.totalorder %s214, %s215
      %p227 = scmp.eq.s32.totalorder %s37, 1
      %p228 = por %p226, %p227
      %p230 = scmp.ne.s32.totalorder %s215, %s229
      %p231 = scmp.eq.s32.totalorder %s37, 0
      %p232 = por %p230, %p231
      %s234 = sadd.s32 %s233, 1
      %p237 = scmp.eq.s32.totalorder %s31, 1
      %p238 = scmp.ne.s32.totalorder %s233, %s235
      %p239 = scmp.eq.s32.totalorder %s31, 0
      %p240 = por %p238, %p239
      %p241 = scmp.ne.s32.totalorder %s233, %s235
      %p242 = scmp.eq.s32.totalorder %s36, 1
      %p243 = por %p241, %p242
      %p244 = scmp.ne.s32.totalorder %s235, %s236
      %p245 = scmp.eq.s32.totalorder %s36, 0
      %p246 = por %p244, %p245
      %p247 = scmp.ne.s32.totalorder %s235, %s236
      %p248 = scmp.eq.s32.totalorder %s37, 1
      %p249 = por %p247, %p248
      %p251 = scmp.ne.s32.totalorder %s236, %s250
      %p252 = scmp.eq.s32.totalorder %s37, 0
      %p253 = por %p251, %p252
      %s255 = sadd.s32 %s254, 1
      %p258 = scmp.eq.s32.totalorder %s31, 1
      %p259 = scmp.ne.s32.totalorder %s254, %s256
      %p260 = scmp.eq.s32.totalorder %s31, 0
      %p261 = por %p259, %p260
      %p262 = scmp.ne.s32.totalorder %s254, %s256
      %p263 = scmp.eq.s32.totalorder %s36, 1
      %p264 = por %p262, %p263
      %p265 = scmp.ne.s32.totalorder %s256, %s257
      %p266 = scmp.eq.s32.totalorder %s36, 0
      %p267 = por %p265, %p266
      %p268 = scmp.ne.s32.totalorder %s256, %s257
      %p269 = scmp.eq.s32.totalorder %s37, 1
      %p270 = por %p268, %p269
      %p272 = scmp.ne.s32.totalorder %s257, %s271
      %p273 = scmp.eq.s32.totalorder %s37, 0
      %p274 = por %p272, %p273
      %s276 = sadd.s32 %s275, 1
      %p279 = scmp.eq.s32.totalorder %s31, 1
      %p280 = scmp.ne.s32.totalorder %s275, %s277
      %p281 = scmp.eq.s32.totalorder %s31, 0
      %p282 = por %p280, %p281
      %p283 = scmp.ne.s32.totalorder %s275, %s277
      %p284 = scmp.eq.s32.totalorder %s36, 1
      %p285 = por %p283, %p284
      %p286 = scmp.ne.s32.totalorder %s277, %s278
      %p287 = scmp.eq.s32.totalorder %s36, 0
      %p288 = por %p286, %p287
      %p289 = scmp.ne.s32.totalorder %s277, %s278
      %p290 = scmp.eq.s32.totalorder %s37, 1
      %p291 = por %p289, %p290
      %p293 = scmp.ne.s32.totalorder %s278, %s292
      %p294 = scmp.eq.s32.totalorder %s37, 0
      %p295 = por %p293, %p294
      %s297 = sadd.s32 %s296, 1
      %p300 = scmp.eq.s32.totalorder %s31, 1
      %p301 = scmp.ne.s32.totalorder %s296, %s298
      %p302 = scmp.eq.s32.totalorder %s31, 0
      %p303 = por %p301, %p302
      %p304 = scmp.ne.s32.totalorder %s296, %s298
      %p305 = scmp.eq.s32.totalorder %s36, 1
      %p306 = por %p304, %p305
      %p307 = scmp.ne.s32.totalorder %s298, %s299
      %p308 = scmp.eq.s32.totalorder %s36, 0
      %p309 = por %p307, %p308
      %p310 = scmp.ne.s32.totalorder %s298, %s299
      %p311 = scmp.eq.s32.totalorder %s37, 1
      %p312 = por %p310, %p311
      %p314 = scmp.ne.s32.totalorder %s299, %s313
      %p315 = scmp.eq.s32.totalorder %s37, 0
      %p316 = por %p314, %p315
      %s318 = sadd.s32 %s317, 1
      %p321 = scmp.eq.s32.totalorder %s31, 1
      %p322 = scmp.ne.s32.totalorder %s317, %s319
      %p323 = scmp.eq.s32.totalorder %s31, 0
      %p324 = por %p322, %p323
      %p325 = scmp.ne.s32.totalorder %s317, %s319
      %p326 = scmp.eq.s32.totalorder %s36, 1
      %p327 = por %p325, %p326
      %p328 = scmp.ne.s32.totalorder %s319, %s320
      %p329 = scmp.eq.s32.totalorder %s36, 0
      %p330 = por %p328, %p329
      %p331 = scmp.ne.s32.totalorder %s319, %s320
      %p332 = scmp.eq.s32.totalorder %s37, 1
      %p333 = por %p331, %p332
      %p335 = scmp.ne.s32.totalorder %s320, %s334
      %p336 = scmp.eq.s32.totalorder %s37, 0
      %p337 = por %p335, %p336
      %s339 = sadd.s32 %s338, 1
      %p342 = scmp.eq.s32.totalorder %s31, 1
      %p343 = scmp.ne.s32.totalorder %s338, %s340
      %p344 = scmp.eq.s32.totalorder %s31, 0
      %p345 = por %p343, %p344
      %p346 = scmp.ne.s32.totalorder %s338, %s340
      %p347 = scmp.eq.s32.totalorder %s36, 1
      %p348 = por %p346, %p347
      %p349 = scmp.ne.s32.totalorder %s340, %s341
      %p350 = scmp.eq.s32.totalorder %s36, 0
      %p351 = por %p349, %p350
      %p352 = scmp.ne.s32.totalorder %s340, %s341
      %p353 = scmp.eq.s32.totalorder %s37, 1
      %p354 = por %p352, %p353
      %p356 = scmp.ne.s32.totalorder %s341, %s355
      %p357 = scmp.eq.s32.totalorder %s37, 0
      %p358 = por %p356, %p357
      %s360 = sadd.s32 %s359, 1
      %p363 = scmp.eq.s32.totalorder %s31, 1
      %p364 = scmp.ne.s32.totalorder %s359, %s361
      %p365 = scmp.eq.s32.totalorder %s31, 0
      %p366 = por %p364, %p365
      %p367 = scmp.ne.s32.totalorder %s359, %s361
      %p368 = scmp.eq.s32.totalorder %s36, 1
      %p369 = por %p367, %p368
      %p370 = scmp.ne.s32.totalorder %s361, %s362
      %p371 = scmp.eq.s32.totalorder %s36, 0
      %p372 = por %p370, %p371
      %p373 = scmp.ne.s32.totalorder %s361, %s362
      %p374 = scmp.eq.s32.totalorder %s37, 1
      %p375 = por %p373, %p374
      %p377 = scmp.ne.s32.totalorder %s362, %s376
      %p378 = scmp.eq.s32.totalorder %s37, 0
      %p379 = por %p377, %p378
      %s381 = sadd.s32 %s380, 1
      %p384 = scmp.eq.s32.totalorder %s31, 1
      %p385 = scmp.ne.s32.totalorder %s380, %s382
      %p386 = scmp.eq.s32.totalorder %s31, 0
      %p387 = por %p385, %p386
      %p388 = scmp.ne.s32.totalorder %s380, %s382
      %p389 = scmp.eq.s32.totalorder %s36, 1
      %p390 = por %p388, %p389
      %p391 = scmp.ne.s32.totalorder %s382, %s383
      %p392 = scmp.eq.s32.totalorder %s36, 0
      %p393 = por %p391, %p392
      %p394 = scmp.ne.s32.totalorder %s382, %s383
      %p395 = scmp.eq.s32.totalorder %s37, 1
      %p396 = por %p394, %p395
      %p398 = scmp.ne.s32.totalorder %s383, %s397
      %p399 = scmp.eq.s32.totalorder %s37, 0
      %p400 = por %p398, %p399
      %s402 = sadd.s32 %s401, 1
      %p405 = scmp.eq.s32.totalorder %s31, 1
      %p406 = scmp.ne.s32.totalorder %s401, %s403
      %p407 = scmp.eq.s32.totalorder %s31, 0
      %p408 = por %p406, %p407
      %p409 = scmp.ne.s32.totalorder %s401, %s403
      %p410 = scmp.eq.s32.totalorder %s36, 1
      %p411 = por %p409, %p410
      %p412 = scmp.ne.s32.totalorder %s403, %s404
      %p413 = scmp.eq.s32.totalorder %s36, 0
      %p414 = por %p412, %p413
      %p415 = scmp.ne.s32.totalorder %s403, %s404
      %p416 = scmp.eq.s32.totalorder %s37, 1
      %p417 = por %p415, %p416
      %p419 = scmp.ne.s32.totalorder %s404, %s418
      %p420 = scmp.eq.s32.totalorder %s37, 0
      %p421 = por %p419, %p420
      %s423 = sadd.s32 %s422, 1
      %p426 = scmp.eq.s32.totalorder %s31, 1
      %p427 = scmp.ne.s32.totalorder %s422, %s424
      %p428 = scmp.eq.s32.totalorder %s31, 0
      %p429 = por %p427, %p428
      %p430 = scmp.ne.s32.totalorder %s422, %s424
      %p431 = scmp.eq.s32.totalorder %s36, 1
      %p432 = por %p430, %p431
      %p433 = scmp.ne.s32.totalorder %s424, %s425
      %p434 = scmp.eq.s32.totalorder %s36, 0
      %p435 = por %p433, %p434
      %p436 = scmp.ne.s32.totalorder %s424, %s425
      %p437 = scmp.eq.s32.totalorder %s37, 1
      %p438 = por %p436, %p437
      %p440 = scmp.ne.s32.totalorder %s425, %s439
      %p441 = scmp.eq.s32.totalorder %s37, 0
      %p442 = por %p440, %p441
      %s443 = ssub.s32 %s31, %s38
      %p444 = scmp.eq.s32.totalorder %s443, 0
      %s446 = sadd.s32 %s445, 1
      %s447 = scalar_select %p444, %s445, %s446
      %p450 = pneg %p444
      %p451 = scmp.eq.s32.totalorder %s31, 1
      %p452 = por %p450, %p451
      %p453 = scmp.ne.s32.totalorder %s445, %s448
      %p454 = scmp.eq.s32.totalorder %s31, 0
      %p455 = por %p453, %p454
      %p456 = scmp.ne.s32.totalorder %s445, %s448
      %p457 = scmp.eq.s32.totalorder %s36, 1
      %p458 = por %p456, %p457
      %p459 = scmp.ne.s32.totalorder %s448, %s449
      %p460 = scmp.eq.s32.totalorder %s36, 0
      %p461 = por %p459, %p460
      %p462 = scmp.ne.s32.totalorder %s448, %s449
      %p463 = scmp.eq.s32.totalorder %s37, 1
      %p464 = por %p462, %p463
      %p466 = scmp.ne.s32.totalorder %s449, %s465
      %p467 = scmp.eq.s32.totalorder %s37, 0
      %p468 = por %p466, %p467
      %p469 = scmp.le.s32.totalorder 1, %s31
      %p470 = scmp.lt.s32.totalorder %s31, 3
      %p471 = pnand %p469, %p470
      %p472 = pneg %p471
      // Predicated region
      $region9: #{tpu_custom_call.1} parent=5 // pred_check
        _
      $region10: #{tpu_custom_call.1} parent=5 // pred_check_branch
        %474 = sbr.rel (%p471) target = $region12
      $region11: #{tpu_custom_call.1} parent=5 // pred_region
        %s475 = ssub.s32 %s31, 1
        // Predicated region
        $region13: #{tpu_custom_call.1} parent=11 // pred_check
          %p476 = pneg %p78
        $region14: #{tpu_custom_call.1} parent=11 // pred_check_branch
          %478 = sbr.rel (%p476) target = $region16
        $region15: #{tpu_custom_call.1} parent=11 // pred_region
          _
        $region16: #{tpu_custom_call.1} parent=11 // pred_fallthru
          _
        // Predicated region
        $region17: #{tpu_custom_call.1} parent=11 // pred_check
          %p479 = pneg %p99
        $region18: #{tpu_custom_call.1} parent=11 // pred_check_branch
          %481 = sbr.rel (%p479) target = $region20
        $region19: #{tpu_custom_call.1} parent=11 // pred_region
          _
        $region20: #{tpu_custom_call.1} parent=11 // pred_fallthru
          _
        // Predicated region
        $region21: #{tpu_custom_call.1} parent=11 // pred_check
          %p482 = pneg %p120
        $region22: #{tpu_custom_call.1} parent=11 // pred_check_branch
          %484 = sbr.rel (%p482) target = $region24
        $region23: #{tpu_custom_call.1} parent=11 // pred_region
          _
        $region24: #{tpu_custom_call.1} parent=11 // pred_fallthru
          _
        // Predicated region
        $region25: #{tpu_custom_call.1} parent=11 // pred_check
          %p485 = pneg %p141
        $region26: #{tpu_custom_call.1} parent=11 // pred_check_branch
          %487 = sbr.rel (%p485) target = $region28
        $region27: #{tpu_custom_call.1} parent=11 // pred_region
          _
        $region28: #{tpu_custom_call.1} parent=11 // pred_fallthru
          _
        // Predicated region
        $region29: #{tpu_custom_call.1} parent=11 // pred_check
          %p488 = pneg %p162
        $region30: #{tpu_custom_call.1} parent=11 // pred_check_branch
          %490 = sbr.rel (%p488) target = $region32
        $region31: #{tpu_custom_call.1} parent=11 // pred_region
          _
        $region32: #{tpu_custom_call.1} parent=11 // pred_fallthru
          _
        // Predicated region
        $region33: #{tpu_custom_call.1} parent=11 // pred_check
          %p491 = pneg %p183
        $region34: #{tpu_custom_call.1} parent=11 // pred_check_branch
          %493 = sbr.rel (%p491) target = $region36
        $region35: #{tpu_custom_call.1} parent=11 // pred_region
          _
        $region36: #{tpu_custom_call.1} parent=11 // pred_fallthru
          _
        // Predicated region
        $region37: #{tpu_custom_call.1} parent=11 // pred_check
          %p494 = pneg %p204
        $region38: #{tpu_custom_call.1} parent=11 // pred_check_branch
          %496 = sbr.rel (%p494) target = $region40
        $region39: #{tpu_custom_call.1} parent=11 // pred_region
          _
        $region40: #{tpu_custom_call.1} parent=11 // pred_fallthru
          _
        // Predicated region
        $region41: #{tpu_custom_call.1} parent=11 // pred_check
          %p497 = pneg %p225
        $region42: #{tpu_custom_call.1} parent=11 // pred_check_branch
          %499 = sbr.rel (%p497) target = $region44
        $region43: #{tpu_custom_call.1} parent=11 // pred_region
          _
        $region44: #{tpu_custom_call.1} parent=11 // pred_fallthru
          _
        // Predicated region
        $region45: #{tpu_custom_call.1} parent=11 // pred_check
          %p500 = pneg %p246
        $region46: #{tpu_custom_call.1} parent=11 // pred_check_branch
          %502 = sbr.rel (%p500) target = $region48
        $region47: #{tpu_custom_call.1} parent=11 // pred_region
          _
        $region48: #{tpu_custom_call.1} parent=11 // pred_fallthru
          _
        // Predicated region
        $region49: #{tpu_custom_call.1} parent=11 // pred_check
          %p503 = pneg %p267
        $region50: #{tpu_custom_call.1} parent=11 // pred_check_branch
          %505 = sbr.rel (%p503) target = $region52
        $region51: #{tpu_custom_call.1} parent=11 // pred_region
          _
        $region52: #{tpu_custom_call.1} parent=11 // pred_fallthru
          _
        // Predicated region
        $region53: #{tpu_custom_call.1} parent=11 // pred_check
          %p506 = pneg %p288
        $region54: #{tpu_custom_call.1} parent=11 // pred_check_branch
          %508 = sbr.rel (%p506) target = $region56
        $region55: #{tpu_custom_call.1} parent=11 // pred_region
          _
        $region56: #{tpu_custom_call.1} parent=11 // pred_fallthru
          _
        // Predicated region
        $region57: #{tpu_custom_call.1} parent=11 // pred_check
          %p509 = pneg %p309
        $region58: #{tpu_custom_call.1} parent=11 // pred_check_branch
          %511 = sbr.rel (%p509) target = $region60
        $region59: #{tpu_custom_call.1} parent=11 // pred_region
          _
        $region60: #{tpu_custom_call.1} parent=11 // pred_fallthru
          _
        // Predicated region
        $region61: #{tpu_custom_call.1} parent=11 // pred_check
          %p512 = pneg %p330
        $region62: #{tpu_custom_call.1} parent=11 // pred_check_branch
          %514 = sbr.rel (%p512) target = $region64
        $region63: #{tpu_custom_call.1} parent=11 // pred_region
          _
        $region64: #{tpu_custom_call.1} parent=11 // pred_fallthru
          _
        // Predicated region
        $region65: #{tpu_custom_call.1} parent=11 // pred_check
          %p515 = pneg %p351
        $region66: #{tpu_custom_call.1} parent=11 // pred_check_branch
          %517 = sbr.rel (%p515) target = $region68
        $region67: #{tpu_custom_call.1} parent=11 // pred_region
          _
        $region68: #{tpu_custom_call.1} parent=11 // pred_fallthru
          _
        // Predicated region
        $region69: #{tpu_custom_call.1} parent=11 // pred_check
          %p518 = pneg %p372
        $region70: #{tpu_custom_call.1} parent=11 // pred_check_branch
          %520 = sbr.rel (%p518) target = $region72
        $region71: #{tpu_custom_call.1} parent=11 // pred_region
          _
        $region72: #{tpu_custom_call.1} parent=11 // pred_fallthru
          _
        // Predicated region
        $region73: #{tpu_custom_call.1} parent=11 // pred_check
          %p521 = pneg %p393
        $region74: #{tpu_custom_call.1} parent=11 // pred_check_branch
          %523 = sbr.rel (%p521) target = $region76
        $region75: #{tpu_custom_call.1} parent=11 // pred_region
          _
        $region76: #{tpu_custom_call.1} parent=11 // pred_fallthru
          _
        // Predicated region
        $region77: #{tpu_custom_call.1} parent=11 // pred_check
          %p524 = pneg %p414
        $region78: #{tpu_custom_call.1} parent=11 // pred_check_branch
          %526 = sbr.rel (%p524) target = $region80
        $region79: #{tpu_custom_call.1} parent=11 // pred_region
          _
        $region80: #{tpu_custom_call.1} parent=11 // pred_fallthru
          _
        // Predicated region
        $region81: #{tpu_custom_call.1} parent=11 // pred_check
          %p527 = pneg %p435
        $region82: #{tpu_custom_call.1} parent=11 // pred_check_branch
          %529 = sbr.rel (%p527) target = $region84
        $region83: #{tpu_custom_call.1} parent=11 // pred_region
          _
        $region84: #{tpu_custom_call.1} parent=11 // pred_fallthru
          _
      $region12: #{tpu_custom_call.1} parent=5 // pred_fallthru
        _
      %p530 = scmp.lt.s32.totalorder %s31, 2
      // Predicated region
      $region85: #{tpu_custom_call.1} parent=5 // pred_check
        %p531 = pneg %p530
      $region86: #{tpu_custom_call.1} parent=5 // pred_check_branch
        %533 = sbr.rel (%p531) target = $region88
      $region87: #{tpu_custom_call.1} parent=5 // pred_region
        // Predicated region
        $region89: #{tpu_custom_call.1} parent=87 // pred_check
          %p534 = pneg %p51
        $region90: #{tpu_custom_call.1} parent=87 // pred_check_branch
          %536 = sbr.rel (%p534) target = $region92
        $region91: #{tpu_custom_call.1} parent=87 // pred_region
          %s537 = sand.u32 %s41, 1
          %s538 = scalar_lea.sflag [#allocation3], %s537
          %s539 = sand.u32 %s41, 1
          %s540 = smul.addr %s539, 8
          %s541 = scalar_lea.vmem [#allocation2], %s540
          %s543 = ssub.s32 128, 128
          %544 = vsyncadd %s538, %s543
          %s545 = smul.addr %s31, 128
          %s546 = scalar_lea.hbm %s0, %s545
          %s548 = sshll.u32 %s541, 4
          %s549 = int_to_ptr.vmem [resolvable:$true] %s548
          %551 = dma.hbm_to_vmem [thread:$0]  %s546, 128, %s549, %s538
        $region92: #{tpu_custom_call.1} parent=87 // pred_fallthru
          _
      $region88: #{tpu_custom_call.1} parent=5 // pred_fallthru
        _
      %p552 = scmp.le.s32.totalorder 1, %s31
      %p553 = scmp.lt.s32.totalorder %s31, 3
      %p554 = pnand %p552, %p553
      %p555 = pneg %p554
      // Predicated region
      $region93: #{tpu_custom_call.1} parent=5 // pred_check
        _
      $region94: #{tpu_custom_call.1} parent=5 // pred_check_branch
        %557 = sbr.rel (%p554) target = $region96
      $region95: #{tpu_custom_call.1} parent=5 // pred_region
        %s558 = ssub.s32 %s31, 1
        %s559 = sand.u32 %s44, 1
        %s560 = scalar_lea.sflag [#allocation3], %s559
        %s561 = sand.u32 %s44, 1
        %s562 = smul.addr %s561, 8
        %s563 = scalar_lea.vmem [#allocation2], %s562
        // Predicated region
        $region97: #{tpu_custom_call.1} parent=95 // pred_check
          %p564 = pneg %p57
        $region98: #{tpu_custom_call.1} parent=95 // pred_check_branch
          %566 = sbr.rel (%p564) target = $region100
        $region99: #{tpu_custom_call.1} parent=95 // pred_region
          %567 = dma.done %s560, 128
        $region100: #{tpu_custom_call.1} parent=95 // pred_fallthru
          _
        %s568 = sand.u32 %s44, 1
        %s569 = scalar_lea.sflag [#allocation3], %s568
        %s570 = sand.u32 %s44, 1
        %s571 = smul.addr %s570, 8
        %s572 = scalar_lea.vmem [#allocation2], %s571
        %p573 = pneg %p57
        %p574 = pneg %p54
        %p575 = pneg %p78
        %p576 = pneg %p75
        %p577 = pneg %p99
        %p578 = pneg %p96
        %p579 = pneg %p120
        %p580 = pneg %p117
        %p581 = pneg %p141
        %p582 = pneg %p138
        %p583 = pneg %p162
        %p584 = pneg %p159
        %p585 = pneg %p183
        %p586 = pneg %p180
        %p587 = pneg %p204
        %p588 = pneg %p201
        %p589 = pneg %p225
        %p590 = pneg %p222
        %p591 = pneg %p246
        %p592 = pneg %p243
        %p593 = pneg %p267
        %p594 = pneg %p264
        %p595 = pneg %p288
        %p596 = pneg %p285
        %p597 = pneg %p309
        %p598 = pneg %p306
        %p599 = pneg %p330
        %p600 = pneg %p327
        %p601 = pneg %p351
        %p602 = pneg %p348
        %p603 = pneg %p372
        %p604 = pneg %p369
        %p605 = pneg %p393
        %p606 = pneg %p390
        %p607 = pneg %p414
        %p608 = pneg %p411
        %p609 = pneg %p435
        %p610 = pneg %p432
        %p611 = pneg %p461
        %p612 = pneg %p458
        %s613 = sand.u32 %s448, 1
        %s614 = scalar_lea.sflag [#allocation4], %s613
        %s615 = sand.u32 %s448, 1
        %s616 = scalar_lea.vmem [#allocation5], %s615
        %v617 = vld [vmem:[%s563] sm:$0xff]
        %v618 = vld [vmem:[%s1] sm:$0xff]
        %v619 = vld [vmem:[%s1 + $0x8] sm:$0xff]
        %v620 = vld [vmem:[%s1 + $0x10] sm:$0xff]
        %v621 = vld [vmem:[%s1 + $0x18] sm:$0xff]
        %v622 = vld [vmem:[%s2] sm:$0x1]
        %v624 = vlaneseq
        %v625 = vshrl.u32 %v624, 7
        %v626 = vsub.s32 0, %v625
        %v627 = vrot.slane %v622, %v626
        %vm629 = vcmask 261120
        %v631 = vsel %vm629, %v617, 0
        %633 = vmatprep.subr.mxu0 0.0
        %634 = vmatpush1.msra.mxu0 %v618
        %635 = vmatprep.subr.mxu0 0.0
        %636 = vmatpush1.msra.mxu0 %v619
        %637 = vmatprep.subr.mxu0 0.0
        %638 = vmatpush1.msra.mxu0 %v620
        %639 = vmatprep.subr.mxu0 0.0
        %640 = vmatpush1.msra.mxu0 %v621
        %641 = vmatprep.subr.mxu0 0.0
        %642 = vmatpush1.msra.mxu0 0.0
        %643 = vmatprep.subr.mxu0 0.0
        %644 = vmatpush1.msra.mxu0 0.0
        %645 = vmatprep.subr.mxu0 0.0
        %646 = vmatpush1.msra.mxu0 0.0
        %647 = vmatprep.subr.mxu0 0.0
        %648 = vmatpush1.msra.mxu0 0.0
        %649 = vmatprep.subr.mxu0 0.0
        %650 = vmatpush1.msra.mxu0 0.0
        %651 = vmatprep.subr.mxu0 0.0
        %652 = vmatpush1.msra.mxu0 0.0
        %653 = vmatprep.subr.mxu0 0.0
        %654 = vmatpush1.msra.mxu0 0.0
        %655 = vmatprep.subr.mxu0 0.0
        %656 = vmatpush1.msra.mxu0 0.0
        %657 = vmatprep.subr.mxu0 0.0
        %658 = vmatpush1.msra.mxu0 0.0
        %659 = vmatprep.subr.mxu0 0.0
        %660 = vmatpush1.msra.mxu0 0.0
        %661 = vmatprep.subr.mxu0 0.0
        %662 = vmatpush1.msra.mxu0 0.0
        %663 = vmatprep.subr.mxu0 0.0
        %664 = vmatpush1.msra.mxu0 0.0
        %665 = vmatprep.subr.mxu0 0.0
        %666 = vmatpush1.msra.mxu0 0.0
        %667 = vmatprep.subr.mxu0 0.0
        %668 = vmatpush1.msra.mxu0 0.0
        %669 = vmatprep.subr.mxu0 0.0
        %670 = vmatpush1.msra.mxu0 0.0
        %671 = vmatprep.subr.mxu0 0.0
        %672 = vmatpush1.msra.mxu0 0.0
        %673 = vmatprep.subr.mxu0 0.0
        %674 = vmatpush1.msra.mxu0 0.0
        %675 = vmatprep.subr.mxu0 0.0
        %676 = vmatpush1.msra.mxu0 0.0
        %677 = vmatprep.subr.mxu0 0.0
        %678 = vmatpush1.msra.mxu0 0.0
        %679 = vmatprep.subr.mxu0 0.0
        %680 = vmatpush1.msra.mxu0 0.0
        %681 = vmatprep.subr.mxu0 0.0
        %682 = vmatpush1.msra.mxu0 0.0
        %683 = vmatprep.subr.mxu0 0.0
        %684 = vmatpush1.msra.mxu0 0.0
        %685 = vmatprep.subr.mxu0 0.0
        %686 = vmatpush1.msra.mxu0 0.0
        %687 = vmatprep.subr.mxu0 0.0
        %688 = vmatpush1.msra.mxu0 0.0
        %689 = vmatprep.subr.mxu0 0.0
        %690 = vmatpush1.msra.mxu0 0.0
        %691 = vmatprep.subr.mxu0 0.0
        %692 = vmatpush1.msra.mxu0 0.0
        %693 = vmatprep.subr.mxu0 0.0
        %694 = vmatpush1.msra.mxu0 0.0
        %695 = vmatprep.subr.mxu0 0.0
        %696 = vmatpush1.msra.mxu0 0.0
        %697 = vmatprep.mubr.f32.mxu0 0.0
        %698 = vmatmul.mubr.f32.gmra.mrb[0].mxu0 %v631
        %v699 = vpop.f32.mrb[0].mxu0
        %v700 = vadd.f32 %v627, %v699
        %v701 = vpop.f32.mrb[0].mxu0
        %702 = vdwg.mxu0
        %v703 = vld [vmem:[%s3] sm:$0xff]
        %v704 = vadd.f32 %v700, %v703
        %v705 = vld [vmem:[%s4] sm:$0xff]
        %v706 = vld [vmem:[%s4 + $0x8] sm:$0xff]
        %v707 = vld [vmem:[%s4 + $0x10] sm:$0xff]
        %v708 = vld [vmem:[%s4 + $0x18] sm:$0xff]
        %v709 = vld [vmem:[%s4 + $0x20] sm:$0xff]
        %v710 = vld [vmem:[%s4 + $0x28] sm:$0xff]
        %v711 = vld [vmem:[%s4 + $0x30] sm:$0xff]
        %v712 = vld [vmem:[%s4 + $0x38] sm:$0xff]
        %v713 = vld [vmem:[%s4 + $0x40] sm:$0xff]
        %v714 = vld [vmem:[%s4 + $0x48] sm:$0xff]
        %v715 = vld [vmem:[%s4 + $0x50] sm:$0xff]
        %v716 = vld [vmem:[%s4 + $0x58] sm:$0xff]
        %v717 = vld [vmem:[%s4 + $0x60] sm:$0xff]
        %v718 = vld [vmem:[%s4 + $0x68] sm:$0xff]
        %v719 = vld [vmem:[%s4 + $0x70] sm:$0xff]
        %v720 = vld [vmem:[%s4 + $0x78] sm:$0xff]
        %vm721 = vcmask 523264
        %v723 = vsel %vm721, %v704, 0
        %725 = vmatprep.subr.mxu0 %v706
        %726 = vmatpush1.msra.mxu0 %v705
        %727 = vmatprep.subr.mxu0 %v708
        %728 = vmatpush1.msra.mxu0 %v707
        %729 = vmatprep.subr.mxu0 %v710
        %730 = vmatpush1.msra.mxu0 %v709
        %731 = vmatprep.subr.mxu0 %v712
        %732 = vmatpush1.msra.mxu0 %v711
        %733 = vmatprep.subr.mxu0 %v714
        %734 = vmatpush1.msra.mxu0 %v713
        %735 = vmatprep.subr.mxu0 %v716
        %736 = vmatpush1.msra.mxu0 %v715
        %737 = vmatprep.subr.mxu0 %v718
        %738 = vmatpush1.msra.mxu0 %v717
        %739 = vmatprep.subr.mxu0 %v720
        %740 = vmatpush1.msra.mxu0 %v719
        %741 = vmatprep.subr.mxu0 0.0
        %742 = vmatpush1.msra.mxu0 0.0
        %743 = vmatprep.subr.mxu0 0.0
        %744 = vmatpush1.msra.mxu0 0.0
        %745 = vmatprep.subr.mxu0 0.0
        %746 = vmatpush1.msra.mxu0 0.0
        %747 = vmatprep.subr.mxu0 0.0
        %748 = vmatpush1.msra.mxu0 0.0
        %749 = vmatprep.subr.mxu0 0.0
        %750 = vmatpush1.msra.mxu0 0.0
        %751 = vmatprep.subr.mxu0 0.0
        %752 = vmatpush1.msra.mxu0 0.0
        %753 = vmatprep.subr.mxu0 0.0
        %754 = vmatpush1.msra.mxu0 0.0
        %755 = vmatprep.subr.mxu0 0.0
        %756 = vmatpush1.msra.mxu0 0.0
        %757 = vmatprep.subr.mxu0 0.0
        %758 = vmatpush1.msra.mxu0 0.0
        %759 = vmatprep.subr.mxu0 0.0
        %760 = vmatpush1.msra.mxu0 0.0
        %761 = vmatprep.subr.mxu0 0.0
        %762 = vmatpush1.msra.mxu0 0.0
        %763 = vmatprep.subr.mxu0 0.0
        %764 = vmatpush1.msra.mxu0 0.0
        %765 = vmatprep.subr.mxu0 0.0
        %766 = vmatpush1.msra.mxu0 0.0
        %767 = vmatprep.subr.mxu0 0.0
        %768 = vmatpush1.msra.mxu0 0.0
        %769 = vmatprep.subr.mxu0 0.0
        %770 = vmatpush1.msra.mxu0 0.0
        %771 = vmatprep.subr.mxu0 0.0
        %772 = vmatpush1.msra.mxu0 0.0
        %773 = vmatprep.subr.mxu0 0.0
        %774 = vmatpush1.msra.mxu0 0.0
        %775 = vmatprep.subr.mxu0 0.0
        %776 = vmatpush1.msra.mxu0 0.0
        %777 = vmatprep.subr.mxu0 0.0
        %778 = vmatpush1.msra.mxu0 0.0
        %779 = vmatprep.subr.mxu0 0.0
        %780 = vmatpush1.msra.mxu0 0.0
        %781 = vmatprep.subr.mxu0 0.0
        %782 = vmatpush1.msra.mxu0 0.0
        %783 = vmatprep.subr.mxu0 0.0
        %784 = vmatpush1.msra.mxu0 0.0
        %785 = vmatprep.subr.mxu0 0.0
        %786 = vmatpush1.msra.mxu0 0.0
        %787 = vmatprep.subr.mxu0 0.0
        %788 = vmatpush1.msra.mxu0 0.0
        %789 = vmatprep.mubr.f32.mxu0 0.0
        %790 = vmatmul.mubr.f32.gmra.mrb[0].mxu0 %v723
        %v791 = vpop.f32.mrb[0].mxu0
        %v792 = vadd.f32 0.0, %v791
        %v793 = vpop.f32.mrb[0].mxu0
        %v794 = vadd.f32 0.0, %v793
        %795 = vdwg.mxu0
        %797 = vrot.lane.b32.xlu0 %v792, 112
        %v798 = vpop.permute.xlu0 %797
        %799 = vrot.lane.b32.xlu0 %v792, 96
        %v800 = vpop.permute.xlu0 %799
        %801 = vrot.lane.b32.xlu0 %v792, 80
        %v802 = vpop.permute.xlu0 %801
        %804 = vrot.lane.b32.xlu0 %v794, 112
        %v805 = vpop.permute.xlu0 %804
        %807 = vrot.lane.b32.xlu0 %v794, 96
        %v808 = vpop.permute.xlu0 %807
        %810 = vrot.lane.b32.xlu0 %v794, 80
        %v811 = vpop.permute.xlu0 %810
        %813 = vrot.lane.b32.xlu0 %v792, 64
        %v814 = vpop.permute.xlu0 %813
        %815 = vrot.lane.b32.xlu0 %v798, 64
        %v816 = vpop.permute.xlu0 %815
        %817 = vrot.lane.b32.xlu0 %v800, 64
        %v818 = vpop.permute.xlu0 %817
        %819 = vrot.lane.b32.xlu0 %v802, 64
        %v820 = vpop.permute.xlu0 %819
        %vm821 = vcmask 130048
        %v822 = vsel %vm821, %v792, 0
        %v824 = vsel %vm821, %v798, 0
        %v826 = vsel %vm821, %v800, 0
        %v828 = vsel %vm821, %v802, 0
        %v830 = vsel %vm821, %v814, 0
        %v832 = vsel %vm821, %v816, 0
        %v834 = vsel %vm821, %v818, 0
        %v836 = vsel %vm821, %v820, 0
        %838 = vmatprep.subr.mxu0 0.0
        %839 = vmatpush1.xpose.msra.mxu0 %v830
        %840 = vmatprep.subr.mxu0 0.0
        %841 = vmatpush1.xpose.msra.mxu0 %v832
        %842 = vmatprep.subr.mxu0 0.0
        %843 = vmatpush1.xpose.msra.mxu0 %v834
        %844 = vmatprep.subr.mxu0 0.0
        %845 = vmatpush1.xpose.msra.mxu0 %v836
        %846 = vmatprep.subr.mxu0 0.0
        %847 = vmatpush1.xpose.msra.mxu0 0.0
        %848 = vmatprep.subr.mxu0 0.0
        %849 = vmatpush1.xpose.msra.mxu0 0.0
        %850 = vmatprep.subr.mxu0 0.0
        %851 = vmatpush1.xpose.msra.mxu0 0.0
        %852 = vmatprep.subr.mxu0 0.0
        %853 = vmatpush1.xpose.msra.mxu0 0.0
        %854 = vmatprep.subr.mxu0 0.0
        %855 = vmatpush1.xpose.msra.mxu0 0.0
        %856 = vmatprep.subr.mxu0 0.0
        %857 = vmatpush1.xpose.msra.mxu0 0.0
        %858 = vmatprep.subr.mxu0 0.0
        %859 = vmatpush1.xpose.msra.mxu0 0.0
        %860 = vmatprep.subr.mxu0 0.0
        %861 = vmatpush1.xpose.msra.mxu0 0.0
        %862 = vmatprep.subr.mxu0 0.0
        %863 = vmatpush1.xpose.msra.mxu0 0.0
        %864 = vmatprep.subr.mxu0 0.0
        %865 = vmatpush1.xpose.msra.mxu0 0.0
        %866 = vmatprep.subr.mxu0 0.0
        %867 = vmatpush1.xpose.msra.mxu0 0.0
        %868 = vmatprep.subr.mxu0 0.0
        %869 = vmatpush1.xpose.msra.mxu0 0.0
        %870 = vmatprep.subr.mxu0 0.0
        %871 = vmatpush1.xpose.msra.mxu0 0.0
        %872 = vmatprep.subr.mxu0 0.0
        %873 = vmatpush1.xpose.msra.mxu0 0.0
        %874 = vmatprep.subr.mxu0 0.0
        %875 = vmatpush1.xpose.msra.mxu0 0.0
        %876 = vmatprep.subr.mxu0 0.0
        %877 = vmatpush1.xpose.msra.mxu0 0.0
        %878 = vmatprep.subr.mxu0 0.0
        %879 = vmatpush1.xpose.msra.mxu0 0.0
        %880 = vmatprep.subr.mxu0 0.0
        %881 = vmatpush1.xpose.msra.mxu0 0.0
        %882 = vmatprep.subr.mxu0 0.0
        %883 = vmatpush1.xpose.msra.mxu0 0.0
        %884 = vmatprep.subr.mxu0 0.0
        %885 = vmatpush1.xpose.msra.mxu0 0.0
        %886 = vmatprep.subr.mxu0 0.0
        %887 = vmatpush1.xpose.msra.mxu0 0.0
        %888 = vmatprep.subr.mxu0 0.0
        %889 = vmatpush1.xpose.msra.mxu0 0.0
        %890 = vmatprep.subr.mxu0 0.0
        %891 = vmatpush1.xpose.msra.mxu0 0.0
        %892 = vmatprep.subr.mxu0 0.0
        %893 = vmatpush1.xpose.msra.mxu0 0.0
        %894 = vmatprep.subr.mxu0 0.0
        %895 = vmatpush1.xpose.msra.mxu0 0.0
        %896 = vmatprep.subr.mxu0 0.0
        %897 = vmatpush1.xpose.msra.mxu0 0.0
        %898 = vmatprep.subr.mxu0 0.0
        %899 = vmatpush1.xpose.msra.mxu0 0.0
        %900 = vmatprep.subr.mxu0 0.0
        %901 = vmatpush1.xpose.msra.mxu0 0.0
        %902 = vmatprep.mubr.f32.mxu0 0.0
        %903 = vmatmul.mubr.f32.gmra.mrb[0].mxu0 %v822
        %v904 = vpop.f32.mrb[0].mxu0
        %v905 = vadd.f32 0.0, %v904
        %v906 = vpop.f32.mrb[0].mxu0
        %907 = vmatprep.mubr.f32.mxu0 0.0
        %908 = vmatmul.mubr.f32.gmra.mrb[0].mxu0 %v824
        %v909 = vpop.f32.mrb[0].mxu0
        %v910 = vadd.f32 0.0, %v909
        %v911 = vpop.f32.mrb[0].mxu0
        %912 = vmatprep.mubr.f32.mxu0 0.0
        %913 = vmatmul.mubr.f32.gmra.mrb[0].mxu0 %v826
        %v914 = vpop.f32.mrb[0].mxu0
        %v915 = vadd.f32 0.0, %v914
        %v916 = vpop.f32.mrb[0].mxu0
        %917 = vmatprep.mubr.f32.mxu0 0.0
        %918 = vmatmul.mubr.f32.gmra.mrb[0].mxu0 %v828
        %v919 = vpop.f32.mrb[0].mxu0
        %v920 = vadd.f32 0.0, %v919
        %v921 = vpop.f32.mrb[0].mxu0
        %922 = vdwg.mxu0
        %v923 = vmul.f32 %v905, 0.25
        %v924 = vmul.f32 %v910, 0.25
        %v925 = vmul.f32 %v915, 0.25
        %v926 = vmul.f32 %v920, 0.25
        %v927 = vld [vmem:[%s5] sm:$0xff]
        %v928 = vld [vmem:[%s5 + $0x8] sm:$0xff]
        %v929 = vld [vmem:[%s5 + $0x10] sm:$0xff]
        %v930 = vld [vmem:[%s5 + $0x18] sm:$0xff]
        %v931 = vadd.f32 %v923, %v927
        %v932 = vadd.f32 %v924, %v928
        %v933 = vadd.f32 %v925, %v929
        %v934 = vadd.f32 %v926, %v930
        %v935 = vsel %vm629, %v931, -inf
        %936 = vmax.xlane.f32.xlu0 %v935
        %v937 = vpop.xlane.xlu0 %936
        %v938 = vsel %vm629, %v932, -inf
        %939 = vmax.xlane.f32.xlu0 %v938
        %v940 = vpop.xlane.xlu0 %939
        %v941 = vsel %vm629, %v933, -inf
        %942 = vmax.xlane.f32.xlu0 %v941
        %v943 = vpop.xlane.xlu0 %942
        %v944 = vsel %vm629, %v934, -inf
        %945 = vmax.xlane.f32.xlu0 %v944
        %v946 = vpop.xlane.xlu0 %945
        %v947 = vsub.f32 %v931, %v937
        %v948 = vsub.f32 %v932, %v940
        %v949 = vsub.f32 %v933, %v943
        %v950 = vsub.f32 %v934, %v946
        %v951 = vmul.f32 %v947, 1.442695
        %v952 = vpow.pop %v951
        %v953 = vmul.f32 %v948, 1.442695
        %v954 = vpow.pop %v953
        %v955 = vmul.f32 %v949, 1.442695
        %v956 = vpow.pop %v955
        %v957 = vmul.f32 %v950, 1.442695
        %v958 = vpow.pop %v957
        %v959 = vsel %vm629, %v952, 0.0
        %960 = vadd.xlane.f32.xlu0 %v959
        %v961 = vpop.xlane.xlu0 %960
        %v962 = vsel %vm629, %v954, 0.0
        %963 = vadd.xlane.f32.xlu0 %v962
        %v964 = vpop.xlane.xlu0 %963
        %v965 = vsel %vm629, %v956, 0.0
        %966 = vadd.xlane.f32.xlu0 %v965
        %v967 = vpop.xlane.xlu0 %966
        %v968 = vsel %vm629, %v958, 0.0
        %969 = vadd.xlane.f32.xlu0 %v968
        %v970 = vpop.xlane.xlu0 %969
        %v971 = vrcp.pop %v961
        %v972 = vrcp.pop %v964
        %v973 = vrcp.pop %v967
        %v974 = vrcp.pop %v970
        %v975 = vmul.f32 %v952, %v971
        %v976 = vmul.f32 %v954, %v972
        %v977 = vmul.f32 %v956, %v973
        %v978 = vmul.f32 %v958, %v974
        %v980 = vsel %vm629, %v975, 0
        %v983 = vsel %vm629, %v976, 0
        %v986 = vsel %vm629, %v977, 0
        %v989 = vsel %vm629, %v978, 0
        %991 = vmatprep.subr.mxu0 0.0
        %992 = vmatpush1.msra.mxu0 %v794
        %993 = vmatprep.subr.mxu0 0.0
        %994 = vmatpush1.msra.mxu0 %v805
        %995 = vmatprep.subr.mxu0 0.0
        %996 = vmatpush1.msra.mxu0 %v808
        %997 = vmatprep.subr.mxu0 0.0
        %998 = vmatpush1.msra.mxu0 %v811
        %999 = vmatprep.subr.mxu0 0.0
        %1000 = vmatpush1.msra.mxu0 0.0
        %1001 = vmatprep.subr.mxu0 0.0
        %1002 = vmatpush1.msra.mxu0 0.0
        %1003 = vmatprep.subr.mxu0 0.0
        %1004 = vmatpush1.msra.mxu0 0.0
        %1005 = vmatprep.subr.mxu0 0.0
        %1006 = vmatpush1.msra.mxu0 0.0
        %1007 = vmatprep.subr.mxu0 0.0
        %1008 = vmatpush1.msra.mxu0 0.0
        %1009 = vmatprep.subr.mxu0 0.0
        %1010 = vmatpush1.msra.mxu0 0.0
        %1011 = vmatprep.subr.mxu0 0.0
        %1012 = vmatpush1.msra.mxu0 0.0
        %1013 = vmatprep.subr.mxu0 0.0
        %1014 = vmatpush1.msra.mxu0 0.0
        %1015 = vmatprep.subr.mxu0 0.0
        %1016 = vmatpush1.msra.mxu0 0.0
        %1017 = vmatprep.subr.mxu0 0.0
        %1018 = vmatpush1.msra.mxu0 0.0
        %1019 = vmatprep.subr.mxu0 0.0
        %1020 = vmatpush1.msra.mxu0 0.0
        %1021 = vmatprep.subr.mxu0 0.0
        %1022 = vmatpush1.msra.mxu0 0.0
        %1023 = vmatprep.subr.mxu0 0.0
        %1024 = vmatpush1.msra.mxu0 0.0
        %1025 = vmatprep.subr.mxu0 0.0
        %1026 = vmatpush1.msra.mxu0 0.0
        %1027 = vmatprep.subr.mxu0 0.0
        %1028 = vmatpush1.msra.mxu0 0.0
        %1029 = vmatprep.subr.mxu0 0.0
        %1030 = vmatpush1.msra.mxu0 0.0
        %1031 = vmatprep.subr.mxu0 0.0
        %1032 = vmatpush1.msra.mxu0 0.0
        %1033 = vmatprep.subr.mxu0 0.0
        %1034 = vmatpush1.msra.mxu0 0.0
        %1035 = vmatprep.subr.mxu0 0.0
        %1036 = vmatpush1.msra.mxu0 0.0
        %1037 = vmatprep.subr.mxu0 0.0
        %1038 = vmatpush1.msra.mxu0 0.0
        %1039 = vmatprep.subr.mxu0 0.0
        %1040 = vmatpush1.msra.mxu0 0.0
        %1041 = vmatprep.subr.mxu0 0.0
        %1042 = vmatpush1.msra.mxu0 0.0
        %1043 = vmatprep.subr.mxu0 0.0
        %1044 = vmatpush1.msra.mxu0 0.0
        %1045 = vmatprep.subr.mxu0 0.0
        %1046 = vmatpush1.msra.mxu0 0.0
        %1047 = vmatprep.subr.mxu0 0.0
        %1048 = vmatpush1.msra.mxu0 0.0
        %1049 = vmatprep.subr.mxu0 0.0
        %1050 = vmatpush1.msra.mxu0 0.0
        %1051 = vmatprep.subr.mxu0 0.0
        %1052 = vmatpush1.msra.mxu0 0.0
        %1053 = vmatprep.subr.mxu0 0.0
        %1054 = vmatpush1.msra.mxu0 0.0
        %1055 = vmatprep.mubr.f32.mxu0 0.0
        %1056 = vmatmul.mubr.f32.gmra.mrb[0].mxu0 %v980
        %v1057 = vpop.f32.mrb[0].mxu0
        %v1058 = vadd.f32 0.0, %v1057
        %v1059 = vpop.f32.mrb[0].mxu0
        %1060 = vmatprep.mubr.f32.mxu0 0.0
        %1061 = vmatmul.mubr.f32.gmra.mrb[0].mxu0 %v983
        %v1062 = vpop.f32.mrb[0].mxu0
        %v1063 = vadd.f32 0.0, %v1062
        %v1064 = vpop.f32.mrb[0].mxu0
        %1065 = vmatprep.mubr.f32.mxu0 0.0
        %1066 = vmatmul.mubr.f32.gmra.mrb[0].mxu0 %v986
        %v1067 = vpop.f32.mrb[0].mxu0
        %v1068 = vadd.f32 0.0, %v1067
        %v1069 = vpop.f32.mrb[0].mxu0
        %1070 = vmatprep.mubr.f32.mxu0 0.0
        %1071 = vmatmul.mubr.f32.gmra.mrb[0].mxu0 %v989
        %v1072 = vpop.f32.mrb[0].mxu0
        %v1073 = vadd.f32 0.0, %v1072
        %v1074 = vpop.f32.mrb[0].mxu0
        %1075 = vdwg.mxu0
        %v1076 = vld [vmem:[%s6] sm:$0xff]
        %v1078 = vsel %vm629, %v1076, 0
        %1080 = vmatprep.subr.mxu0 0.0
        %1081 = vmatpush1.msra.mxu0 %v1058
        %1082 = vmatprep.subr.mxu0 0.0
        %1083 = vmatpush1.msra.mxu0 %v1063
        %1084 = vmatprep.subr.mxu0 0.0
        %1085 = vmatpush1.msra.mxu0 %v1068
        %1086 = vmatprep.subr.mxu0 0.0
        %1087 = vmatpush1.msra.mxu0 %v1073
        %1088 = vmatprep.subr.mxu0 0.0
        %1089 = vmatpush1.msra.mxu0 0.0
        %1090 = vmatprep.subr.mxu0 0.0
        %1091 = vmatpush1.msra.mxu0 0.0
        %1092 = vmatprep.subr.mxu0 0.0
        %1093 = vmatpush1.msra.mxu0 0.0
        %1094 = vmatprep.subr.mxu0 0.0
        %1095 = vmatpush1.msra.mxu0 0.0
        %1096 = vmatprep.subr.mxu0 0.0
        %1097 = vmatpush1.msra.mxu0 0.0
        %1098 = vmatprep.subr.mxu0 0.0
        %1099 = vmatpush1.msra.mxu0 0.0
        %1100 = vmatprep.subr.mxu0 0.0
        %1101 = vmatpush1.msra.mxu0 0.0
        %1102 = vmatprep.subr.mxu0 0.0
        %1103 = vmatpush1.msra.mxu0 0.0
        %1104 = vmatprep.subr.mxu0 0.0
        %1105 = vmatpush1.msra.mxu0 0.0
        %1106 = vmatprep.subr.mxu0 0.0
        %1107 = vmatpush1.msra.mxu0 0.0
        %1108 = vmatprep.subr.mxu0 0.0
        %1109 = vmatpush1.msra.mxu0 0.0
        %1110 = vmatprep.subr.mxu0 0.0
        %1111 = vmatpush1.msra.mxu0 0.0
        %1112 = vmatprep.subr.mxu0 0.0
        %1113 = vmatpush1.msra.mxu0 0.0
        %1114 = vmatprep.subr.mxu0 0.0
        %1115 = vmatpush1.msra.mxu0 0.0
        %1116 = vmatprep.subr.mxu0 0.0
        %1117 = vmatpush1.msra.mxu0 0.0
        %1118 = vmatprep.subr.mxu0 0.0
        %1119 = vmatpush1.msra.mxu0 0.0
        %1120 = vmatprep.subr.mxu0 0.0
        %1121 = vmatpush1.msra.mxu0 0.0
        %1122 = vmatprep.subr.mxu0 0.0
        %1123 = vmatpush1.msra.mxu0 0.0
        %1124 = vmatprep.subr.mxu0 0.0
        %1125 = vmatpush1.msra.mxu0 0.0
        %1126 = vmatprep.subr.mxu0 0.0
        %1127 = vmatpush1.msra.mxu0 0.0
        %1128 = vmatprep.subr.mxu0 0.0
        %1129 = vmatpush1.msra.mxu0 0.0
        %1130 = vmatprep.subr.mxu0 0.0
        %1131 = vmatpush1.msra.mxu0 0.0
        %1132 = vmatprep.subr.mxu0 0.0
        %1133 = vmatpush1.msra.mxu0 0.0
        %1134 = vmatprep.subr.mxu0 0.0
        %1135 = vmatpush1.msra.mxu0 0.0
        %1136 = vmatprep.subr.mxu0 0.0
        %1137 = vmatpush1.msra.mxu0 0.0
        %1138 = vmatprep.subr.mxu0 0.0
        %1139 = vmatpush1.msra.mxu0 0.0
        %1140 = vmatprep.subr.mxu0 0.0
        %1141 = vmatpush1.msra.mxu0 0.0
        %1142 = vmatprep.subr.mxu0 0.0
        %1143 = vmatpush1.msra.mxu0 0.0
        %1144 = vmatprep.mubr.f32.mxu0 0.0
        %1145 = vmatmul.mubr.f32.gmra.mrb[0].mxu0 %v1078
        %v1146 = vpop.f32.mrb[0].mxu0
        %v1147 = vadd.f32 0.0, %v1146
        %v1148 = vpop.f32.mrb[0].mxu0
        %1149 = vdwg.mxu0
        %s1150 = scalar_lea.vmem %s6, 8
        %v1151 = vld [vmem:[%s1150] sm:$0xff]
        %v1153 = vsel %vm629, %v1151, 0
        %1155 = vmatprep.subr.mxu0 0.0
        %1156 = vmatpush1.msra.mxu0 %v1058
        %1157 = vmatprep.subr.mxu0 0.0
        %1158 = vmatpush1.msra.mxu0 %v1063
        %1159 = vmatprep.subr.mxu0 0.0
        %1160 = vmatpush1.msra.mxu0 %v1068
        %1161 = vmatprep.subr.mxu0 0.0
        %1162 = vmatpush1.msra.mxu0 %v1073
        %1163 = vmatprep.subr.mxu0 0.0
        %1164 = vmatpush1.msra.mxu0 0.0
        %1165 = vmatprep.subr.mxu0 0.0
        %1166 = vmatpush1.msra.mxu0 0.0
        %1167 = vmatprep.subr.mxu0 0.0
        %1168 = vmatpush1.msra.mxu0 0.0
        %1169 = vmatprep.subr.mxu0 0.0
        %1170 = vmatpush1.msra.mxu0 0.0
        %1171 = vmatprep.subr.mxu0 0.0
        %1172 = vmatpush1.msra.mxu0 0.0
        %1173 = vmatprep.subr.mxu0 0.0
        %1174 = vmatpush1.msra.mxu0 0.0
        %1175 = vmatprep.subr.mxu0 0.0
        %1176 = vmatpush1.msra.mxu0 0.0
        %1177 = vmatprep.subr.mxu0 0.0
        %1178 = vmatpush1.msra.mxu0 0.0
        %1179 = vmatprep.subr.mxu0 0.0
        %1180 = vmatpush1.msra.mxu0 0.0
        %1181 = vmatprep.subr.mxu0 0.0
        %1182 = vmatpush1.msra.mxu0 0.0
        %1183 = vmatprep.subr.mxu0 0.0
        %1184 = vmatpush1.msra.mxu0 0.0
        %1185 = vmatprep.subr.mxu0 0.0
        %1186 = vmatpush1.msra.mxu0 0.0
        %1187 = vmatprep.subr.mxu0 0.0
        %1188 = vmatpush1.msra.mxu0 0.0
        %1189 = vmatprep.subr.mxu0 0.0
        %1190 = vmatpush1.msra.mxu0 0.0
        %1191 = vmatprep.subr.mxu0 0.0
        %1192 = vmatpush1.msra.mxu0 0.0
        %1193 = vmatprep.subr.mxu0 0.0
        %1194 = vmatpush1.msra.mxu0 0.0
        %1195 = vmatprep.subr.mxu0 0.0
        %1196 = vmatpush1.msra.mxu0 0.0
        %1197 = vmatprep.subr.mxu0 0.0
        %1198 = vmatpush1.msra.mxu0 0.0
        %1199 = vmatprep.subr.mxu0 0.0
        %1200 = vmatpush1.msra.mxu0 0.0
        %1201 = vmatprep.subr.mxu0 0.0
        %1202 = vmatpush1.msra.mxu0 0.0
        %1203 = vmatprep.subr.mxu0 0.0
        %1204 = vmatpush1.msra.mxu0 0.0
        %1205 = vmatprep.subr.mxu0 0.0
        %1206 = vmatpush1.msra.mxu0 0.0
        %1207 = vmatprep.subr.mxu0 0.0
        %1208 = vmatpush1.msra.mxu0 0.0
        %1209 = vmatprep.subr.mxu0 0.0
        %1210 = vmatpush1.msra.mxu0 0.0
        %1211 = vmatprep.subr.mxu0 0.0
        %1212 = vmatpush1.msra.mxu0 0.0
        %1213 = vmatprep.subr.mxu0 0.0
        %1214 = vmatpush1.msra.mxu0 0.0
        %1215 = vmatprep.subr.mxu0 0.0
        %1216 = vmatpush1.msra.mxu0 0.0
        %1217 = vmatprep.subr.mxu0 0.0
        %1218 = vmatpush1.msra.mxu0 0.0
        %1219 = vmatprep.mubr.f32.mxu0 0.0
        %1220 = vmatmul.mubr.f32.gmra.mrb[0].mxu0 %v1153
        %v1221 = vpop.f32.mrb[0].mxu0
        %v1222 = vadd.f32 0.0, %v1221
        %v1223 = vpop.f32.mrb[0].mxu0
        %1224 = vdwg.mxu0
        %s1225 = scalar_lea.vmem %s6, 16
        %v1226 = vld [vmem:[%s1225] sm:$0xff]
        %v1228 = vsel %vm629, %v1226, 0
        %1230 = vmatprep.subr.mxu0 0.0
        %1231 = vmatpush1.msra.mxu0 %v1058
        %1232 = vmatprep.subr.mxu0 0.0
        %1233 = vmatpush1.msra.mxu0 %v1063
        %1234 = vmatprep.subr.mxu0 0.0
        %1235 = vmatpush1.msra.mxu0 %v1068
        %1236 = vmatprep.subr.mxu0 0.0
        %1237 = vmatpush1.msra.mxu0 %v1073
        %1238 = vmatprep.subr.mxu0 0.0
        %1239 = vmatpush1.msra.mxu0 0.0
        %1240 = vmatprep.subr.mxu0 0.0
        %1241 = vmatpush1.msra.mxu0 0.0
        %1242 = vmatprep.subr.mxu0 0.0
        %1243 = vmatpush1.msra.mxu0 0.0
        %1244 = vmatprep.subr.mxu0 0.0
        %1245 = vmatpush1.msra.mxu0 0.0
        %1246 = vmatprep.subr.mxu0 0.0
        %1247 = vmatpush1.msra.mxu0 0.0
        %1248 = vmatprep.subr.mxu0 0.0
        %1249 = vmatpush1.msra.mxu0 0.0
        %1250 = vmatprep.subr.mxu0 0.0
        %1251 = vmatpush1.msra.mxu0 0.0
        %1252 = vmatprep.subr.mxu0 0.0
        %1253 = vmatpush1.msra.mxu0 0.0
        %1254 = vmatprep.subr.mxu0 0.0
        %1255 = vmatpush1.msra.mxu0 0.0
        %1256 = vmatprep.subr.mxu0 0.0
        %1257 = vmatpush1.msra.mxu0 0.0
        %1258 = vmatprep.subr.mxu0 0.0
        %1259 = vmatpush1.msra.mxu0 0.0
        %1260 = vmatprep.subr.mxu0 0.0
        %1261 = vmatpush1.msra.mxu0 0.0
        %1262 = vmatprep.subr.mxu0 0.0
        %1263 = vmatpush1.msra.mxu0 0.0
        %1264 = vmatprep.subr.mxu0 0.0
        %1265 = vmatpush1.msra.mxu0 0.0
        %1266 = vmatprep.subr.mxu0 0.0
        %1267 = vmatpush1.msra.mxu0 0.0
        %1268 = vmatprep.subr.mxu0 0.0
        %1269 = vmatpush1.msra.mxu0 0.0
        %1270 = vmatprep.subr.mxu0 0.0
        %1271 = vmatpush1.msra.mxu0 0.0
        %1272 = vmatprep.subr.mxu0 0.0
        %1273 = vmatpush1.msra.mxu0 0.0
        %1274 = vmatprep.subr.mxu0 0.0
        %1275 = vmatpush1.msra.mxu0 0.0
        %1276 = vmatprep.subr.mxu0 0.0
        %1277 = vmatpush1.msra.mxu0 0.0
        %1278 = vmatprep.subr.mxu0 0.0
        %1279 = vmatpush1.msra.mxu0 0.0
        %1280 = vmatprep.subr.mxu0 0.0
        %1281 = vmatpush1.msra.mxu0 0.0
        %1282 = vmatprep.subr.mxu0 0.0
        %1283 = vmatpush1.msra.mxu0 0.0
        %1284 = vmatprep.subr.mxu0 0.0
        %1285 = vmatpush1.msra.mxu0 0.0
        %1286 = vmatprep.subr.mxu0 0.0
        %1287 = vmatpush1.msra.mxu0 0.0
        %1288 = vmatprep.subr.mxu0 0.0
        %1289 = vmatpush1.msra.mxu0 0.0
        %1290 = vmatprep.subr.mxu0 0.0
        %1291 = vmatpush1.msra.mxu0 0.0
        %1292 = vmatprep.subr.mxu0 0.0
        %1293 = vmatpush1.msra.mxu0 0.0
        %1294 = vmatprep.mubr.f32.mxu0 0.0
        %1295 = vmatmul.mubr.f32.gmra.mrb[0].mxu0 %v1228
        %v1296 = vpop.f32.mrb[0].mxu0
        %v1297 = vadd.f32 0.0, %v1296
        %v1298 = vpop.f32.mrb[0].mxu0
        %1299 = vdwg.mxu0
        %s1300 = scalar_lea.vmem %s6, 24
        %v1301 = vld [vmem:[%s1300] sm:$0xff]
        %v1303 = vsel %vm629, %v1301, 0
        %1305 = vmatprep.subr.mxu0 0.0
        %1306 = vmatpush1.msra.mxu0 %v1058
        %1307 = vmatprep.subr.mxu0 0.0
        %1308 = vmatpush1.msra.mxu0 %v1063
        %1309 = vmatprep.subr.mxu0 0.0
        %1310 = vmatpush1.msra.mxu0 %v1068
        %1311 = vmatprep.subr.mxu0 0.0
        %1312 = vmatpush1.msra.mxu0 %v1073
        %1313 = vmatprep.subr.mxu0 0.0
        %1314 = vmatpush1.msra.mxu0 0.0
        %1315 = vmatprep.subr.mxu0 0.0
        %1316 = vmatpush1.msra.mxu0 0.0
        %1317 = vmatprep.subr.mxu0 0.0
        %1318 = vmatpush1.msra.mxu0 0.0
        %1319 = vmatprep.subr.mxu0 0.0
        %1320 = vmatpush1.msra.mxu0 0.0
        %1321 = vmatprep.subr.mxu0 0.0
        %1322 = vmatpush1.msra.mxu0 0.0
        %1323 = vmatprep.subr.mxu0 0.0
        %1324 = vmatpush1.msra.mxu0 0.0
        %1325 = vmatprep.subr.mxu0 0.0
        %1326 = vmatpush1.msra.mxu0 0.0
        %1327 = vmatprep.subr.mxu0 0.0
        %1328 = vmatpush1.msra.mxu0 0.0
        %1329 = vmatprep.subr.mxu0 0.0
        %1330 = vmatpush1.msra.mxu0 0.0
        %1331 = vmatprep.subr.mxu0 0.0
        %1332 = vmatpush1.msra.mxu0 0.0
        %1333 = vmatprep.subr.mxu0 0.0
        %1334 = vmatpush1.msra.mxu0 0.0
        %1335 = vmatprep.subr.mxu0 0.0
        %1336 = vmatpush1.msra.mxu0 0.0
        %1337 = vmatprep.subr.mxu0 0.0
        %1338 = vmatpush1.msra.mxu0 0.0
        %1339 = vmatprep.subr.mxu0 0.0
        %1340 = vmatpush1.msra.mxu0 0.0
        %1341 = vmatprep.subr.mxu0 0.0
        %1342 = vmatpush1.msra.mxu0 0.0
        %1343 = vmatprep.subr.mxu0 0.0
        %1344 = vmatpush1.msra.mxu0 0.0
        %1345 = vmatprep.subr.mxu0 0.0
        %1346 = vmatpush1.msra.mxu0 0.0
        %1347 = vmatprep.subr.mxu0 0.0
        %1348 = vmatpush1.msra.mxu0 0.0
        %1349 = vmatprep.subr.mxu0 0.0
        %1350 = vmatpush1.msra.mxu0 0.0
        %1351 = vmatprep.subr.mxu0 0.0
        %1352 = vmatpush1.msra.mxu0 0.0
        %1353 = vmatprep.subr.mxu0 0.0
        %1354 = vmatpush1.msra.mxu0 0.0
        %1355 = vmatprep.subr.mxu0 0.0
        %1356 = vmatpush1.msra.mxu0 0.0
        %1357 = vmatprep.subr.mxu0 0.0
        %1358 = vmatpush1.msra.mxu0 0.0
        %1359 = vmatprep.subr.mxu0 0.0
        %1360 = vmatpush1.msra.mxu0 0.0
        %1361 = vmatprep.subr.mxu0 0.0
        %1362 = vmatpush1.msra.mxu0 0.0
        %1363 = vmatprep.subr.mxu0 0.0
        %1364 = vmatpush1.msra.mxu0 0.0
        %1365 = vmatprep.subr.mxu0 0.0
        %1366 = vmatpush1.msra.mxu0 0.0
        %1367 = vmatprep.subr.mxu0 0.0
        %1368 = vmatpush1.msra.mxu0 0.0
        %1369 = vmatprep.mubr.f32.mxu0 0.0
        %1370 = vmatmul.mubr.f32.gmra.mrb[0].mxu0 %v1303
        %v1371 = vpop.f32.mrb[0].mxu0
        %v1372 = vadd.f32 0.0, %v1371
        %v1373 = vpop.f32.mrb[0].mxu0
        %1374 = vdwg.mxu0
        %1376 = vrot.lane.b32.xlu0 %v1222, 16
        %v1377 = vpop.permute.xlu0 %1376
        %1380 = vrot.lane.b32.xlu0 %v1297, 32
        %v1381 = vpop.permute.xlu0 %1380
        %1384 = vrot.lane.b32.xlu0 %v1372, 48
        %v1385 = vpop.permute.xlu0 %1384
        %v1387 = vsel %vm821, %v1147, %v1377
        %v1388 = vsel %vm629, %v1387, %v1381
        %vm1389 = vcmask 392192
        %v1390 = vsel %vm1389, %v1388, %v1385
        %v1391 = vld [vmem:[%s7] sm:$0xff]
        %v1392 = vld [vmem:[%s7 + $0x8] sm:$0xff]
        %v1393 = vld [vmem:[%s7 + $0x10] sm:$0xff]
        %v1394 = vld [vmem:[%s7 + $0x18] sm:$0xff]
        %v1395 = vld [vmem:[%s7 + $0x20] sm:$0xff]
        %v1396 = vld [vmem:[%s7 + $0x28] sm:$0xff]
        %v1397 = vld [vmem:[%s7 + $0x30] sm:$0xff]
        %v1398 = vld [vmem:[%s7 + $0x38] sm:$0xff]
        %v1400 = vsel %vm721, %v1390, 0
        %1402 = vmatprep.subr.mxu0 0.0
        %1403 = vmatpush1.msra.mxu0 %v1391
        %1404 = vmatprep.subr.mxu0 0.0
        %1405 = vmatpush1.msra.mxu0 %v1392
        %1406 = vmatprep.subr.mxu0 0.0
        %1407 = vmatpush1.msra.mxu0 %v1393
        %1408 = vmatprep.subr.mxu0 0.0
        %1409 = vmatpush1.msra.mxu0 %v1394
        %1410 = vmatprep.subr.mxu0 0.0
        %1411 = vmatpush1.msra.mxu0 %v1395
        %1412 = vmatprep.subr.mxu0 0.0
        %1413 = vmatpush1.msra.mxu0 %v1396
        %1414 = vmatprep.subr.mxu0 0.0
        %1415 = vmatpush1.msra.mxu0 %v1397
        %1416 = vmatprep.subr.mxu0 0.0
        %1417 = vmatpush1.msra.mxu0 %v1398
        %1418 = vmatprep.subr.mxu0 0.0
        %1419 = vmatpush1.msra.mxu0 0.0
        %1420 = vmatprep.subr.mxu0 0.0
        %1421 = vmatpush1.msra.mxu0 0.0
        %1422 = vmatprep.subr.mxu0 0.0
        %1423 = vmatpush1.msra.mxu0 0.0
        %1424 = vmatprep.subr.mxu0 0.0
        %1425 = vmatpush1.msra.mxu0 0.0
        %1426 = vmatprep.subr.mxu0 0.0
        %1427 = vmatpush1.msra.mxu0 0.0
        %1428 = vmatprep.subr.mxu0 0.0
        %1429 = vmatpush1.msra.mxu0 0.0
        %1430 = vmatprep.subr.mxu0 0.0
        %1431 = vmatpush1.msra.mxu0 0.0
        %1432 = vmatprep.subr.mxu0 0.0
        %1433 = vmatpush1.msra.mxu0 0.0
        %1434 = vmatprep.subr.mxu0 0.0
        %1435 = vmatpush1.msra.mxu0 0.0
        %1436 = vmatprep.subr.mxu0 0.0
        %1437 = vmatpush1.msra.mxu0 0.0
        %1438 = vmatprep.subr.mxu0 0.0
        %1439 = vmatpush1.msra.mxu0 0.0
        %1440 = vmatprep.subr.mxu0 0.0
        %1441 = vmatpush1.msra.mxu0 0.0
        %1442 = vmatprep.subr.mxu0 0.0
        %1443 = vmatpush1.msra.mxu0 0.0
        %1444 = vmatprep.subr.mxu0 0.0
        %1445 = vmatpush1.msra.mxu0 0.0
        %1446 = vmatprep.subr.mxu0 0.0
        %1447 = vmatpush1.msra.mxu0 0.0
        %1448 = vmatprep.subr.mxu0 0.0
        %1449 = vmatpush1.msra.mxu0 0.0
        %1450 = vmatprep.subr.mxu0 0.0
        %1451 = vmatpush1.msra.mxu0 0.0
        %1452 = vmatprep.subr.mxu0 0.0
        %1453 = vmatpush1.msra.mxu0 0.0
        %1454 = vmatprep.subr.mxu0 0.0
        %1455 = vmatpush1.msra.mxu0 0.0
        %1456 = vmatprep.subr.mxu0 0.0
        %1457 = vmatpush1.msra.mxu0 0.0
        %1458 = vmatprep.subr.mxu0 0.0
        %1459 = vmatpush1.msra.mxu0 0.0
        %1460 = vmatprep.subr.mxu0 0.0
        %1461 = vmatpush1.msra.mxu0 0.0
        %1462 = vmatprep.subr.mxu0 0.0
        %1463 = vmatpush1.msra.mxu0 0.0
        %1464 = vmatprep.subr.mxu0 0.0
        %1465 = vmatpush1.msra.mxu0 0.0
        %1466 = vmatprep.mubr.f32.mxu0 0.0
        %1467 = vmatmul.mubr.f32.gmra.mrb[0].mxu0 %v1400
        %v1468 = vpop.f32.mrb[0].mxu0
        %v1469 = vadd.f32 %v704, %v1468
        %v1470 = vpop.f32.mrb[0].mxu0
        %1471 = vdwg.mxu0
        %v1472 = vld [vmem:[%s8] sm:$0x1]
        %v1473 = vld [vmem:[%s9] sm:$0x1]
        %v1474 = vsel %vm721, %v1469, 0.0
        %1475 = vadd.xlane.f32.xlu0 %v1474
        %v1476 = vpop.xlane.xlu0 %1475
        %v1477 = vrcp.pop 64.0
        %v1478 = vmul.f32 %v1476, %v1477
        %v1479 = vsub.f32 %v1469, %v1478
        %v1480 = vmul.f32 %v1479, %v1479
        %v1481 = vsel %vm721, %v1480, 0.0
        %1482 = vadd.xlane.f32.xlu0 %v1481
        %v1483 = vpop.xlane.xlu0 %1482
        %v1484 = vmul.f32 %v1483, %v1477
        %v1485 = vadd.f32 %v1484, 1e-05
        %v1486 = vrsqrt.pop %v1485
        %v1487 = vmul.f32 %v1479, %v1486
        %v1489 = vlaneseq
        %v1490 = vshrl.u32 %v1489, 7
        %v1491 = vsub.s32 0, %v1490
        %v1492 = vrot.slane %v1472, %v1491
        %v1494 = vmul.f32 %v1487, %v1492
        %v1496 = vlaneseq
        %v1497 = vshrl.u32 %v1496, 7
        %v1498 = vsub.s32 0, %v1497
        %v1499 = vrot.slane %v1473, %v1498
        %v1501 = vadd.f32 %v1494, %v1499
        %v1502 = vld [vmem:[%s10] sm:$0xff]
        %v1503 = vld [vmem:[%s10 + $0x8] sm:$0xff]
        %v1504 = vld [vmem:[%s10 + $0x10] sm:$0xff]
        %v1505 = vld [vmem:[%s10 + $0x18] sm:$0xff]
        %v1506 = vld [vmem:[%s10 + $0x20] sm:$0xff]
        %v1507 = vld [vmem:[%s10 + $0x28] sm:$0xff]
        %v1508 = vld [vmem:[%s10 + $0x30] sm:$0xff]
        %v1509 = vld [vmem:[%s10 + $0x38] sm:$0xff]
        %v1510 = vld [vmem:[%s10 + $0x40] sm:$0xff]
        %v1511 = vld [vmem:[%s10 + $0x48] sm:$0xff]
        %v1512 = vld [vmem:[%s10 + $0x50] sm:$0xff]
        %v1513 = vld [vmem:[%s10 + $0x58] sm:$0xff]
        %v1514 = vld [vmem:[%s10 + $0x60] sm:$0xff]
        %v1515 = vld [vmem:[%s10 + $0x68] sm:$0xff]
        %v1516 = vld [vmem:[%s10 + $0x70] sm:$0xff]
        %v1517 = vld [vmem:[%s10 + $0x78] sm:$0xff]
        %v1518 = vld [vmem:[%s11] sm:$0x3]
        %v1520 = vlaneseq
        %v1521 = vshrl.u32 %v1520, 7
        %v1522 = vsub.s32 0, %v1521
        %v1523 = vrot.slane %v1518, %v1522
        %v1524 = vlaneseq
        %v1525 = vshrl.u32 %v1524, 7
        %v1526 = vsub.s32 1, %v1525
        %v1527 = vrot.slane %v1518, %v1526
        %v1531 = vsel %vm721, %v1501, 0
        %1533 = vmatprep.subr.mxu0 %v1503
        %1534 = vmatpush1.msra.mxu0 %v1502
        %1535 = vmatprep.subr.mxu0 %v1505
        %1536 = vmatpush1.msra.mxu0 %v1504
        %1537 = vmatprep.subr.mxu0 %v1507
        %1538 = vmatpush1.msra.mxu0 %v1506
        %1539 = vmatprep.subr.mxu0 %v1509
        %1540 = vmatpush1.msra.mxu0 %v1508
        %1541 = vmatprep.subr.mxu0 %v1511
        %1542 = vmatpush1.msra.mxu0 %v1510
        %1543 = vmatprep.subr.mxu0 %v1513
        %1544 = vmatpush1.msra.mxu0 %v1512
        %1545 = vmatprep.subr.mxu0 %v1515
        %1546 = vmatpush1.msra.mxu0 %v1514
        %1547 = vmatprep.subr.mxu0 %v1517
        %1548 = vmatpush1.msra.mxu0 %v1516
        %1549 = vmatprep.subr.mxu0 0.0
        %1550 = vmatpush1.msra.mxu0 0.0
        %1551 = vmatprep.subr.mxu0 0.0
        %1552 = vmatpush1.msra.mxu0 0.0
        %1553 = vmatprep.subr.mxu0 0.0
        %1554 = vmatpush1.msra.mxu0 0.0
        %1555 = vmatprep.subr.mxu0 0.0
        %1556 = vmatpush1.msra.mxu0 0.0
        %1557 = vmatprep.subr.mxu0 0.0
        %1558 = vmatpush1.msra.mxu0 0.0
        %1559 = vmatprep.subr.mxu0 0.0
        %1560 = vmatpush1.msra.mxu0 0.0
        %1561 = vmatprep.subr.mxu0 0.0
        %1562 = vmatpush1.msra.mxu0 0.0
        %1563 = vmatprep.subr.mxu0 0.0
        %1564 = vmatpush1.msra.mxu0 0.0
        %1565 = vmatprep.subr.mxu0 0.0
        %1566 = vmatpush1.msra.mxu0 0.0
        %1567 = vmatprep.subr.mxu0 0.0
        %1568 = vmatpush1.msra.mxu0 0.0
        %1569 = vmatprep.subr.mxu0 0.0
        %1570 = vmatpush1.msra.mxu0 0.0
        %1571 = vmatprep.subr.mxu0 0.0
        %1572 = vmatpush1.msra.mxu0 0.0
        %1573 = vmatprep.subr.mxu0 0.0
        %1574 = vmatpush1.msra.mxu0 0.0
        %1575 = vmatprep.subr.mxu0 0.0
        %1576 = vmatpush1.msra.mxu0 0.0
        %1577 = vmatprep.subr.mxu0 0.0
        %1578 = vmatpush1.msra.mxu0 0.0
        %1579 = vmatprep.subr.mxu0 0.0
        %1580 = vmatpush1.msra.mxu0 0.0
        %1581 = vmatprep.subr.mxu0 0.0
        %1582 = vmatpush1.msra.mxu0 0.0
        %1583 = vmatprep.subr.mxu0 0.0
        %1584 = vmatpush1.msra.mxu0 0.0
        %1585 = vmatprep.subr.mxu0 0.0
        %1586 = vmatpush1.msra.mxu0 0.0
        %1587 = vmatprep.subr.mxu0 0.0
        %1588 = vmatpush1.msra.mxu0 0.0
        %1589 = vmatprep.subr.mxu0 0.0
        %1590 = vmatpush1.msra.mxu0 0.0
        %1591 = vmatprep.subr.mxu0 0.0
        %1592 = vmatpush1.msra.mxu0 0.0
        %1593 = vmatprep.subr.mxu0 0.0
        %1594 = vmatpush1.msra.mxu0 0.0
        %1595 = vmatprep.subr.mxu0 0.0
        %1596 = vmatpush1.msra.mxu0 0.0
        %1597 = vmatprep.mubr.f32.mxu0 0.0
        %1598 = vmatmul.mubr.f32.gmra.mrb[0].mxu0 %v1531
        %v1599 = vpop.f32.mrb[0].mxu0
        %v1600 = vadd.f32 %v1523, %v1599
        %v1601 = vpop.f32.mrb[0].mxu0
        %v1602 = vadd.f32 %v1527, %v1601
        %1603 = vdwg.mxu0
        %v1604 = vmax.f32 %v1600, 0.0
        %v1605 = vmax.f32 %v1602, 0.0
        %v1606 = vld [vmem:[%s12] sm:$0xff]
        %v1607 = vld [vmem:[%s12 + $0x8] sm:$0xff]
        %v1608 = vld [vmem:[%s12 + $0x10] sm:$0xff]
        %v1609 = vld [vmem:[%s12 + $0x18] sm:$0xff]
        %v1610 = vld [vmem:[%s12 + $0x20] sm:$0xff]
        %v1611 = vld [vmem:[%s12 + $0x28] sm:$0xff]
        %v1612 = vld [vmem:[%s12 + $0x30] sm:$0xff]
        %v1613 = vld [vmem:[%s12 + $0x38] sm:$0xff]
        %v1614 = vld [vmem:[%s12 + $0x40] sm:$0xff]
        %v1615 = vld [vmem:[%s12 + $0x48] sm:$0xff]
        %v1616 = vld [vmem:[%s12 + $0x50] sm:$0xff]
        %v1617 = vld [vmem:[%s12 + $0x58] sm:$0xff]
        %v1618 = vld [vmem:[%s12 + $0x60] sm:$0xff]
        %v1619 = vld [vmem:[%s12 + $0x68] sm:$0xff]
        %v1620 = vld [vmem:[%s12 + $0x70] sm:$0xff]
        %v1621 = vld [vmem:[%s12 + $0x78] sm:$0xff]
        %v1622 = vld [vmem:[%s12 + $0x80] sm:$0xff]
        %v1623 = vld [vmem:[%s12 + $0x88] sm:$0xff]
        %v1624 = vld [vmem:[%s12 + $0x90] sm:$0xff]
        %v1625 = vld [vmem:[%s12 + $0x98] sm:$0xff]
        %v1626 = vld [vmem:[%s12 + $0xa0] sm:$0xff]
        %v1627 = vld [vmem:[%s12 + $0xa8] sm:$0xff]
        %v1628 = vld [vmem:[%s12 + $0xb0] sm:$0xff]
        %v1629 = vld [vmem:[%s12 + $0xb8] sm:$0xff]
        %v1630 = vld [vmem:[%s12 + $0xc0] sm:$0xff]
        %v1631 = vld [vmem:[%s12 + $0xc8] sm:$0xff]
        %v1632 = vld [vmem:[%s12 + $0xd0] sm:$0xff]
        %v1633 = vld [vmem:[%s12 + $0xd8] sm:$0xff]
        %v1634 = vld [vmem:[%s12 + $0xe0] sm:$0xff]
        %v1635 = vld [vmem:[%s12 + $0xe8] sm:$0xff]
        %v1636 = vld [vmem:[%s12 + $0xf0] sm:$0xff]
        %v1637 = vld [vmem:[%s12 + $0xf8] sm:$0xff]
        %v1638 = vld [vmem:[%s13] sm:$0x1]
        %v1640 = vlaneseq
        %v1641 = vshrl.u32 %v1640, 7
        %v1642 = vsub.s32 0, %v1641
        %v1643 = vrot.slane %v1638, %v1642
        %1645 = vmatprep.subr.mxu0 0.0
        %1646 = vmatpush1.msra.mxu0 %v1606
        %1647 = vmatprep.subr.mxu0 0.0
        %1648 = vmatpush1.msra.mxu0 %v1607
        %1649 = vmatprep.subr.mxu0 0.0
        %1650 = vmatpush1.msra.mxu0 %v1608
        %1651 = vmatprep.subr.mxu0 0.0
        %1652 = vmatpush1.msra.mxu0 %v1609
        %1653 = vmatprep.subr.mxu0 0.0
        %1654 = vmatpush1.msra.mxu0 %v1610
        %1655 = vmatprep.subr.mxu0 0.0
        %1656 = vmatpush1.msra.mxu0 %v1611
        %1657 = vmatprep.subr.mxu0 0.0
        %1658 = vmatpush1.msra.mxu0 %v1612
        %1659 = vmatprep.subr.mxu0 0.0
        %1660 = vmatpush1.msra.mxu0 %v1613
        %1661 = vmatprep.subr.mxu0 0.0
        %1662 = vmatpush1.msra.mxu0 %v1614
        %1663 = vmatprep.subr.mxu0 0.0
        %1664 = vmatpush1.msra.mxu0 %v1615
        %1665 = vmatprep.subr.mxu0 0.0
        %1666 = vmatpush1.msra.mxu0 %v1616
        %1667 = vmatprep.subr.mxu0 0.0
        %1668 = vmatpush1.msra.mxu0 %v1617
        %1669 = vmatprep.subr.mxu0 0.0
        %1670 = vmatpush1.msra.mxu0 %v1618
        %1671 = vmatprep.subr.mxu0 0.0
        %1672 = vmatpush1.msra.mxu0 %v1619
        %1673 = vmatprep.subr.mxu0 0.0
        %1674 = vmatpush1.msra.mxu0 %v1620
        %1675 = vmatprep.subr.mxu0 0.0
        %1676 = vmatpush1.msra.mxu0 %v1621
        %1677 = vmatprep.subr.mxu0 0.0
        %1678 = vmatpush1.msra.mxu0 %v1622
        %1679 = vmatprep.subr.mxu0 0.0
        %1680 = vmatpush1.msra.mxu0 %v1623
        %1681 = vmatprep.subr.mxu0 0.0
        %1682 = vmatpush1.msra.mxu0 %v1624
        %1683 = vmatprep.subr.mxu0 0.0
        %1684 = vmatpush1.msra.mxu0 %v1625
        %1685 = vmatprep.subr.mxu0 0.0
        %1686 = vmatpush1.msra.mxu0 %v1626
        %1687 = vmatprep.subr.mxu0 0.0
        %1688 = vmatpush1.msra.mxu0 %v1627
        %1689 = vmatprep.subr.mxu0 0.0
        %1690 = vmatpush1.msra.mxu0 %v1628
        %1691 = vmatprep.subr.mxu0 0.0
        %1692 = vmatpush1.msra.mxu0 %v1629
        %1693 = vmatprep.subr.mxu0 0.0
        %1694 = vmatpush1.msra.mxu0 %v1630
        %1695 = vmatprep.subr.mxu0 0.0
        %1696 = vmatpush1.msra.mxu0 %v1631
        %1697 = vmatprep.subr.mxu0 0.0
        %1698 = vmatpush1.msra.mxu0 %v1632
        %1699 = vmatprep.subr.mxu0 0.0
        %1700 = vmatpush1.msra.mxu0 %v1633
        %1701 = vmatprep.subr.mxu0 0.0
        %1702 = vmatpush1.msra.mxu0 %v1634
        %1703 = vmatprep.subr.mxu0 0.0
        %1704 = vmatpush1.msra.mxu0 %v1635
        %1705 = vmatprep.subr.mxu0 0.0
        %1706 = vmatpush1.msra.mxu0 %v1636
        %1707 = vmatprep.subr.mxu0 0.0
        %1708 = vmatpush1.msra.mxu0 %v1637
        %1709 = vmatprep.mubr.f32.mxu0 %v1605
        %1710 = vmatmul.mubr.f32.gmra.mrb[0].mxu0 %v1604
        %v1711 = vpop.f32.mrb[0].mxu0
        %v1712 = vadd.f32 %v1643, %v1711
        %v1713 = vpop.f32.mrb[0].mxu0
        %1714 = vdwg.mxu0
        %v1715 = vadd.f32 %v1712, %v1501
        %v1716 = vld [vmem:[%s14] sm:$0x1]
        %v1717 = vld [vmem:[%s15] sm:$0x1]
        %v1718 = vsel %vm721, %v1715, 0.0
        %1719 = vadd.xlane.f32.xlu0 %v1718
        %v1720 = vpop.xlane.xlu0 %1719
        %v1721 = vmul.f32 %v1720, %v1477
        %v1722 = vsub.f32 %v1715, %v1721
        %v1723 = vmul.f32 %v1722, %v1722
        %v1724 = vsel %vm721, %v1723, 0.0
        %1725 = vadd.xlane.f32.xlu0 %v1724
        %v1726 = vpop.xlane.xlu0 %1725
        %v1727 = vmul.f32 %v1726, %v1477
        %v1728 = vadd.f32 %v1727, 1e-05
        %v1729 = vrsqrt.pop %v1728
        %v1730 = vmul.f32 %v1722, %v1729
        %v1732 = vlaneseq
        %v1733 = vshrl.u32 %v1732, 7
        %v1734 = vsub.s32 0, %v1733
        %v1735 = vrot.slane %v1716, %v1734
        %v1737 = vmul.f32 %v1730, %v1735
        %v1739 = vlaneseq
        %v1740 = vshrl.u32 %v1739, 7
        %v1741 = vsub.s32 0, %v1740
        %v1742 = vrot.slane %v1717, %v1741
        %v1744 = vadd.f32 %v1737, %v1742
        %v1745 = vld [vmem:[%s16] sm:$0xf]
        %v1746 = vld [vmem:[%s16 + $0x4] sm:$0xf]
        %v1747 = vld [vmem:[%s16 + $0x8] sm:$0xf]
        %v1748 = vld [vmem:[%s16 + $0xc] sm:$0xf]
        %v1749 = vld [vmem:[%s16 + $0x10] sm:$0xf]
        %v1750 = vld [vmem:[%s16 + $0x14] sm:$0xf]
        %v1751 = vld [vmem:[%s16 + $0x18] sm:$0xf]
        %v1752 = vld [vmem:[%s16 + $0x1c] sm:$0xf]
        %v1753 = vsel %vm821, %v1744, -inf
        %1754 = vmax.xlane.f32.xlu0 %v1753
        %v1755 = vpop.xlane.xlu0 %1754
        %v1764 = vrot.slane %v1746, 7
        %vm1765 = vcmask 1041409
        %v1766 = vsel %vm1765, %v1764, %v1745
        %v1767 = vrot.slane %v1747, 6
        %vm1768 = vcmask 1042434
        %v1769 = vsel %vm1768, %v1767, %v1766
        %v1770 = vrot.slane %v1748, 5
        %vm1771 = vcmask 1043459
        %v1772 = vsel %vm1771, %v1770, %v1769
        %v1773 = vrot.slane %v1749, 4
        %vm1774 = vcmask 1044484
        %v1775 = vsel %vm1774, %v1773, %v1772
        %v1776 = vrot.slane %v1750, 3
        %vm1777 = vcmask 1045509
        %v1778 = vsel %vm1777, %v1776, %v1775
        %v1779 = vrot.slane %v1751, 2
        %vm1780 = vcmask 1046534
        %v1781 = vsel %vm1780, %v1779, %v1778
        %v1782 = vrot.slane %v1752, 1
        %vm1783 = vcmask 1047559
        %v1784 = vsel %vm1783, %v1782, %v1781
        %v1786 = vmul.f32 %v1755, %v1784
        %v1787 = vadd.f32 %v1786, 0.0
        %vm1788 = vcmask 261248
        %v1789 = vsel %vm1788, %v1744, -inf
        %1790 = vmax.xlane.f32.xlu0 %v1789
        %v1791 = vpop.xlane.xlu0 %1790
        %v1792 = vrot.slane %v1745, 1
        %v1793 = vsel %vm1765, %v1746, %v1792
        %v1794 = vrot.slane %v1747, 7
        %v1795 = vsel %vm1768, %v1794, %v1793
        %v1796 = vrot.slane %v1748, 6
        %v1797 = vsel %vm1771, %v1796, %v1795
        %v1798 = vrot.slane %v1749, 5
        %v1799 = vsel %vm1774, %v1798, %v1797
        %v1800 = vrot.slane %v1750, 4
        %v1801 = vsel %vm1777, %v1800, %v1799
        %v1802 = vrot.slane %v1751, 3
        %v1803 = vsel %vm1780, %v1802, %v1801
        %v1804 = vrot.slane %v1752, 2
        %v1805 = vsel %vm1783, %v1804, %v1803
        %v1807 = vmul.f32 %v1791, %v1805
        %v1808 = vadd.f32 %v1787, %v1807
        %vm1809 = vcmask 392448
        %v1810 = vsel %vm1809, %v1744, -inf
        %1811 = vmax.xlane.f32.xlu0 %v1810
        %v1812 = vpop.xlane.xlu0 %1811
        %v1813 = vrot.slane %v1745, 2
        %v1814 = vrot.slane %v1746, 1
        %v1815 = vsel %vm1765, %v1814, %v1813
        %v1816 = vsel %vm1768, %v1747, %v1815
        %v1817 = vrot.slane %v1748, 7
        %v1818 = vsel %vm1771, %v1817, %v1816
        %v1819 = vrot.slane %v1749, 6
        %v1820 = vsel %vm1774, %v1819, %v1818
        %v1821 = vrot.slane %v1750, 5
        %v1822 = vsel %vm1777, %v1821, %v1820
        %v1823 = vrot.slane %v1751, 4
        %v1824 = vsel %vm1780, %v1823, %v1822
        %v1825 = vrot.slane %v1752, 3
        %v1826 = vsel %vm1783, %v1825, %v1824
        %v1828 = vmul.f32 %v1812, %v1826
        %v1829 = vadd.f32 %v1808, %v1828
        %vm1830 = vcmask 523648
        %v1831 = vsel %vm1830, %v1744, -inf
        %1832 = vmax.xlane.f32.xlu0 %v1831
        %v1833 = vpop.xlane.xlu0 %1832
        %v1834 = vrot.slane %v1745, 3
        %v1835 = vrot.slane %v1746, 2
        %v1836 = vsel %vm1765, %v1835, %v1834
        %v1837 = vrot.slane %v1747, 1
        %v1838 = vsel %vm1768, %v1837, %v1836
        %v1839 = vsel %vm1771, %v1748, %v1838
        %v1840 = vrot.slane %v1749, 7
        %v1841 = vsel %vm1774, %v1840, %v1839
        %v1842 = vrot.slane %v1750, 6
        %v1843 = vsel %vm1777, %v1842, %v1841
        %v1844 = vrot.slane %v1751, 5
        %v1845 = vsel %vm1780, %v1844, %v1843
        %v1846 = vrot.slane %v1752, 4
        %v1847 = vsel %vm1783, %v1846, %v1845
        %v1849 = vmul.f32 %v1833, %v1847
        %v1850 = vadd.f32 %v1829, %v1849
        %v1851 = vld [vmem:[%s18] sm:$0x1]
        %v1852 = vld [vmem:[%s17] sm:$0x1]
        %vm1853 = vcmask 64512
        %v1855 = vsel %vm1853, %v1851, 0
        %1857 = vmatprep.subr.mxu0 0.0
        %1858 = vmatpush1.msra.mxu0 %v1850
        %1859 = vmatprep.subr.mxu0 0.0
        %1860 = vmatpush1.msra.mxu0 0.0
        %1861 = vmatprep.subr.mxu0 0.0
        %1862 = vmatpush1.msra.mxu0 0.0
        %1863 = vmatprep.subr.mxu0 0.0
        %1864 = vmatpush1.msra.mxu0 0.0
        %1865 = vmatprep.subr.mxu0 0.0
        %1866 = vmatpush1.msra.mxu0 0.0
        %1867 = vmatprep.subr.mxu0 0.0
        %1868 = vmatpush1.msra.mxu0 0.0
        %1869 = vmatprep.subr.mxu0 0.0
        %1870 = vmatpush1.msra.mxu0 0.0
        %1871 = vmatprep.subr.mxu0 0.0
        %1872 = vmatpush1.msra.mxu0 0.0
        %1873 = vmatprep.subr.mxu0 0.0
        %1874 = vmatpush1.msra.mxu0 0.0
        %1875 = vmatprep.subr.mxu0 0.0
        %1876 = vmatpush1.msra.mxu0 0.0
        %1877 = vmatprep.subr.mxu0 0.0
        %1878 = vmatpush1.msra.mxu0 0.0
        %1879 = vmatprep.subr.mxu0 0.0
        %1880 = vmatpush1.msra.mxu0 0.0
        %1881 = vmatprep.subr.mxu0 0.0
        %1882 = vmatpush1.msra.mxu0 0.0
        %1883 = vmatprep.subr.mxu0 0.0
        %1884 = vmatpush1.msra.mxu0 0.0
        %1885 = vmatprep.subr.mxu0 0.0
        %1886 = vmatpush1.msra.mxu0 0.0
        %1887 = vmatprep.subr.mxu0 0.0
        %1888 = vmatpush1.msra.mxu0 0.0
        %1889 = vmatprep.subr.mxu0 0.0
        %1890 = vmatpush1.msra.mxu0 0.0
        %1891 = vmatprep.subr.mxu0 0.0
        %1892 = vmatpush1.msra.mxu0 0.0
        %1893 = vmatprep.subr.mxu0 0.0
        %1894 = vmatpush1.msra.mxu0 0.0
        %1895 = vmatprep.subr.mxu0 0.0
        %1896 = vmatpush1.msra.mxu0 0.0
        %1897 = vmatprep.subr.mxu0 0.0
        %1898 = vmatpush1.msra.mxu0 0.0
        %1899 = vmatprep.subr.mxu0 0.0
        %1900 = vmatpush1.msra.mxu0 0.0
        %1901 = vmatprep.subr.mxu0 0.0
        %1902 = vmatpush1.msra.mxu0 0.0
        %1903 = vmatprep.subr.mxu0 0.0
        %1904 = vmatpush1.msra.mxu0 0.0
        %1905 = vmatprep.subr.mxu0 0.0
        %1906 = vmatpush1.msra.mxu0 0.0
        %1907 = vmatprep.subr.mxu0 0.0
        %1908 = vmatpush1.msra.mxu0 0.0
        %1909 = vmatprep.subr.mxu0 0.0
        %1910 = vmatpush1.msra.mxu0 0.0
        %1911 = vmatprep.subr.mxu0 0.0
        %1912 = vmatpush1.msra.mxu0 0.0
        %1913 = vmatprep.subr.mxu0 0.0
        %1914 = vmatpush1.msra.mxu0 0.0
        %1915 = vmatprep.subr.mxu0 0.0
        %1916 = vmatpush1.msra.mxu0 0.0
        %1917 = vmatprep.subr.mxu0 0.0
        %1918 = vmatpush1.msra.mxu0 0.0
        %1919 = vmatprep.subr.mxu0 0.0
        %1920 = vmatpush1.msra.mxu0 0.0
        %1921 = vmatprep.mubr.f32.mxu0 0.0
        %1922 = vmatmul.mubr.f32.gmra.mrb[0].mxu0 %v1855
        %v1923 = vpop.f32.mrb[0].mxu0
        %v1924 = vadd.f32 %v1852, %v1923
        %v1925 = vpop.f32.mrb[0].mxu0
        %1926 = vdwg.mxu0
        %vm1927 = vcmask 8192
        %v1928 = vsel %vm1927, %v1924, -inf
        %1929 = vmax.xlane.f32.xlu0 %v1928
        %v1930 = vpop.xlane.xlu0 %1929
        %v1931 = vsub.f32 %v1924, %v1930
        %v1932 = vmul.f32 %v1931, 1.442695
        %v1933 = vpow.pop %v1932
        %v1934 = vsel %vm1927, %v1933, 0.0
        %1935 = vadd.xlane.f32.xlu0 %v1934
        %v1936 = vpop.xlane.xlu0 %1935
        %v1937 = vlog2.pop %v1936
        %v1938 = vmul.f32 %v1937, 0.6931472
        %v1939 = vsub.f32 %v1931, %v1938
        %1940 = vst.msk [vmem:[%s616] sm:$0x1] %vm1927, %v1939
        %s1941 = sand.u32 %s448, 1
        %s1942 = scalar_lea.sflag [#allocation4], %s1941
        %s1943 = sand.u32 %s448, 1
        %s1944 = scalar_lea.vmem [#allocation5], %s1943
        // Predicated region
        $region101: #{tpu_custom_call.1} parent=95 // pred_check
          %p1945 = pneg %p458
        $region102: #{tpu_custom_call.1} parent=95 // pred_check_branch
          %1947 = sbr.rel (%p1945) target = $region104
        $region103: #{tpu_custom_call.1} parent=95 // pred_region
          %s1949 = ssub.s32 16, 16
          %1950 = vsyncadd %s1942, %s1949
          %s1951 = smul.addr %s36, 16
          %s1952 = scalar_lea.hbm %s19, %s1951
          %s1954 = sshll.u32 %s1944, 4
          %s1955 = int_to_ptr.vmem [resolvable:$true] %s1954
          %1957 = dma.vmem_to_hbm [thread:$0]  %s1955, 16, %s1952, %s1942
        $region104: #{tpu_custom_call.1} parent=95 // pred_fallthru
          _
      $region96: #{tpu_custom_call.1} parent=5 // pred_fallthru
        _
      %p1958 = scmp.le.s32.totalorder 2, %s31
      // Predicated region
      $region105: #{tpu_custom_call.1} parent=5 // pred_check
        %p1959 = pneg %p1958
      $region106: #{tpu_custom_call.1} parent=5 // pred_check_branch
        %1961 = sbr.rel (%p1959) target = $region108
      $region107: #{tpu_custom_call.1} parent=5 // pred_region
        %s1962 = ssub.s32 %s31, 2
        // Predicated region
        $region109: #{tpu_custom_call.1} parent=107 // pred_check
          %p1963 = pneg %p464
        $region110: #{tpu_custom_call.1} parent=107 // pred_check_branch
          %1965 = sbr.rel (%p1963) target = $region112
        $region111: #{tpu_custom_call.1} parent=107 // pred_region
          %s1966 = sand.u32 %s449, 1
          %s1967 = scalar_lea.sflag [#allocation4], %s1966
          %s1968 = sand.u32 %s449, 1
          %s1969 = scalar_lea.vmem [#allocation5], %s1968
          %1970 = dma.done %s1967, 16
        $region112: #{tpu_custom_call.1} parent=107 // pred_fallthru
          _
      $region108: #{tpu_custom_call.1} parent=5 // pred_fallthru
        _
    $region6: #{tpu_custom_call.1} parent=1 // loop_footer
      %s35 = sadd.s32 1, %s31
    $region7: #{tpu_custom_call.1} parent=1 // loop_footer_branch
      %30 = sbr.rel target = $region3
    $region8: #{tpu_custom_call.1} parent=1 // loop_exit
      _
    %1971 = vsyncpa [#allocation3], 1
    %s1972 = scalar_lea.sflag [#allocation3], 1
    %1973 = vsyncpa %s1972, 1
    %1974 = vsyncpa [#allocation4], 1
    %s1975 = scalar_lea.sflag [#allocation4], 1
    %1976 = vsyncpa %s1975, 1

</llo_original>
